<compile_context>
chip_gen: v7x
topology: tpu7x:2x2x1
jax: 0.10.0
libtpu: 0.0.40
codegen_flags: <defaults>
</compile_context>

<pallas_src>
import jax
import jax.numpy as jnp
from jax.experimental import pallas as pl
from jax.experimental.pallas import tpu as pltpu

# Problem sizes (match the PyTorch module / its test input)
N, CIN, HIN, WIN = 2, 3, 10, 7
COUT, K = 32, 4
HOUT, WOUT = HIN + K - 1, WIN + K - 1          # 13, 10  (stride=1, padding=0 transposed conv)
SCALE = 5.3506

# Kernel-internal layout constants
CIN_PAD = 16                   # channels zero-padded 3 -> 16 (one packed bf16 sublane tile)
SW = 16                        # flattened-plane row stride (>= WOUT + K - 1)
P = 16 * SW                    # 256 flat output positions per image (2 full lane tiles)
HP = 24                        # padded plane height; HP*SW is a multiple of 128
XFLAT = HP * SW                # 384
NTAPS = K * K                  # 16
KDIM = NTAPS * CIN_PAD         # 256: fused contraction depth (fills the 256-deep MXU)
NP = N * P                     # 512: fused output lane width (batch folded into lanes)


def convt_leaky_kernel(x_ref, w_ref, o_ref, cols_ref):
    # x_ref:    (N, CIN_PAD, XFLAT) bf16  -- zero-padded input planes, flattened, row stride SW
    # w_ref:    (COUT, KDIM)        bf16  -- flipped weights, index [f, t*CIN_PAD + c]
    # o_ref:    (N, COUT, P)        f32   -- lane-dense flat output planes
    # cols_ref: (KDIM, NP)          bf16  -- im2col scratch (VMEM)
    #
    # Build the im2col slab: each of the 16 taps is a static lane-offset window of the flat
    # plane; each (16, 256) window is copied exactly once into a sublane/lane-aligned block.
    for t in range(NTAPS):
        a, b = t // K, t % K
        off = a * SW + b
        for n in range(N):
            cols_ref[pl.ds(t * CIN_PAD, CIN_PAD), pl.ds(n * P, P)] = \
                x_ref[n, :, pl.ds(off, P)]
    # One fused matmul: (32, 256) @ (256, 512), f32 accumulation inside the MXU.
    y = jnp.dot(w_ref[...], cols_ref[...], preferred_element_type=jnp.float32)
    # Fused elementwise epilogue in f32: where(y > 0, y, y * 5.3506).
    y = jnp.where(y > 0, y, y * SCALE)
    # Lane-aligned (multiple-of-256) writebacks -> unmasked stores.
    for n in range(N):
        o_ref[n] = y[:, n * P:(n + 1) * P]


def _pallas_convt(xflat, wslab):
    return pl.pallas_call(
        convt_leaky_kernel,
        out_shape=jax.ShapeDtypeStruct((N, COUT, P), jnp.float32),
        grid=(1,),
        in_specs=[
            pl.BlockSpec((N, CIN_PAD, XFLAT), lambda i: (0, 0, 0)),
            pl.BlockSpec((COUT, KDIM), lambda i: (0, 0)),
        ],
        out_specs=pl.BlockSpec((N, COUT, P), lambda i: (0, 0, 0)),
        scratch_shapes=[pltpu.VMEM((KDIM, NP), jnp.bfloat16)],
    )(xflat, wslab)


def prepare_weights(w_pt):
    """One-time weight transform (hoisted out of the per-call jitted path).

    w_pt: (CIN, COUT, K, K) PyTorch ConvTranspose2d layout.
    Returns a (COUT, KDIM) bf16 slab with
        wslab[f, t*CIN_PAD + c] = w_pt[c, f, K-1-a, K-1-b],  t = a*K + b  (spatial flip).
    """
    wflip = w_pt[:, :, ::-1, ::-1]                                      # (CIN, COUT, K, K)
    wtaps = jnp.transpose(wflip, (2, 3, 1, 0)).reshape(NTAPS, COUT, CIN)
    wtaps = jnp.pad(wtaps, ((0, 0), (0, 0), (0, CIN_PAD - CIN)))        # (NTAPS, COUT, CIN_PAD)
    wslab = jnp.transpose(wtaps, (1, 0, 2)).reshape(COUT, KDIM)
    return wslab.astype(jnp.bfloat16)


@jax.jit
def conv_transpose_model(x_nchw, wslab):
    """x_nchw: (N, CIN, HIN, WIN) f32; wslab: pre-transformed (COUT, KDIM) bf16 weights."""
    # Input prep (one small fusion): zero-pad spatially by K-1 on top/left (+ slack on
    # bottom/right so every shifted tap window stays in bounds), pad channels 3->16,
    # flatten the plane with row stride SW, cast to bf16.
    xp = jnp.pad(x_nchw, ((0, 0),
                          (0, CIN_PAD - CIN),
                          (K - 1, HP - (K - 1) - HIN),
                          (K - 1, SW - (K - 1) - WIN)))
    xflat = xp.reshape(N, CIN_PAD, XFLAT).astype(jnp.bfloat16)

    out = _pallas_convt(xflat, wslab)                                   # (N, COUT, P) f32

    # Un-flatten the output plane and crop to the valid region -> NCHW directly (no transpose).
    return out.reshape(N, COUT, P // SW, SW)[:, :, :HOUT, :WOUT]


def reference(x, w):
    # Independent plain-JAX reference (scatter form of transpose conv), f32 throughout.
    y = jnp.zeros((N, COUT, HOUT, WOUT), jnp.float32)
    for kh in range(K):
        for kw in range(K):
            y = y.at[:, :, kh:kh + HIN, kw:kw + WIN].add(
                jnp.einsum('nchw,cf->nfhw', x, w[:, :, kh, kw]))
    return jnp.where(y > 0, y, y * SCALE)


if __name__ == "__main__":
    key = jax.random.PRNGKey(0)
    kx, kw_key = jax.random.split(key)
    # PyTorch ConvTranspose2d weight shape: (Cin, Cout, K, K)
    x = jax.random.normal(kx, (N, CIN, HIN, WIN), jnp.float32)
    w = jax.random.normal(kw_key, (CIN, COUT, K, K), jnp.float32) * 0.1

    wslab = jax.block_until_ready(prepare_weights(w))    # one-time weight transform
    out = jax.block_until_ready(conv_transpose_model(x, wslab))

    assert out.shape == (N, COUT, HOUT, WOUT), out.shape
    assert out.dtype == jnp.float32

    # Tight structural check: same bf16-rounded operands fed to the f32 reference.
    ref_q = reference(x.astype(jnp.bfloat16).astype(jnp.float32),
                      w.astype(jnp.bfloat16).astype(jnp.float32))
    assert jnp.allclose(out, ref_q, atol=1e-3, rtol=1e-3)

    # Loose check vs the exact f32 reference (bounds the bf16 input-rounding error).
    ref = reference(x, w)
    assert jnp.allclose(out, ref, atol=1e-1, rtol=1e-1)

    print("KERNEL_OK")
</pallas_src>

<mosaic_0001>
module attributes {stable_mosaic.version = 11 : i64} {
  func.func @convt_leaky_kernel(%arg0: i32, %arg1: memref<2x16x384xbf16, #tpu.memory_space<vmem>>, %arg2: memref<32x256xbf16, #tpu.memory_space<vmem>>, %arg3: memref<2x32x256xf32, #tpu.memory_space<vmem>>, %arg4: memref<256x512xbf16, #tpu.memory_space<vmem>>) attributes {dimension_semantics = [#tpu.dimension_semantics<arbitrary>], iteration_bounds = array<i64: 1>, scalar_prefetch = 0 : i64, scratch_operands = 1 : i64, tpu.core_type = #tpu.core_type<tc>, window_params = [{pipeline_mode = #tpu.pipeline_mode<synchronous>, transform_indices = @transform_0, window_bounds = array<i64: 2, 16, 384>}, {pipeline_mode = #tpu.pipeline_mode<synchronous>, transform_indices = @transform_1, window_bounds = array<i64: 32, 256>}, {pipeline_mode = #tpu.pipeline_mode<synchronous>, transform_indices = @transform_2, window_bounds = array<i64: 2, 32, 256>}]} {
    %c0 = arith.constant 0 : index
    %c0_0 = arith.constant 0 : index
    %c0_1 = arith.constant 0 : index
    %0 = vector.load %arg1[%c0, %c0_0, %c0_1] : memref<2x16x384xbf16, #tpu.memory_space<vmem>>, vector<1x16x256xbf16>
    %1 = vector.shape_cast %0 : vector<1x16x256xbf16> to vector<16x256xbf16>
    %c0_2 = arith.constant 0 : index
    %c0_3 = arith.constant 0 : index
    %2 = vector.load %arg4[%c0_2, %c0_3] : memref<256x512xbf16, #tpu.memory_space<vmem>>, vector<16x256xbf16>
    tpu.vector_store %arg4[%c0_2, %c0_3], %1 {strides = array<i32>} : memref<256x512xbf16, #tpu.memory_space<vmem>>, vector<16x256xbf16>,
    %c1 = arith.constant 1 : index
    %c0_4 = arith.constant 0 : index
    %c0_5 = arith.constant 0 : index
    %3 = vector.load %arg1[%c1, %c0_4, %c0_5] : memref<2x16x384xbf16, #tpu.memory_space<vmem>>, vector<1x16x256xbf16>
    %4 = vector.shape_cast %3 : vector<1x16x256xbf16> to vector<16x256xbf16>
    %c0_6 = arith.constant 0 : index
    %c256 = arith.constant 256 : index
    %5 = vector.load %arg4[%c0_6, %c256] : memref<256x512xbf16, #tpu.memory_space<vmem>>, vector<16x256xbf16>
    tpu.vector_store %arg4[%c0_6, %c256], %4 {strides = array<i32>} : memref<256x512xbf16, #tpu.memory_space<vmem>>, vector<16x256xbf16>,
    %c0_7 = arith.constant 0 : index
    %c0_8 = arith.constant 0 : index
    %c1_9 = arith.constant 1 : index
    %6 = vector.load %arg1[%c0_7, %c0_8, %c1_9] : memref<2x16x384xbf16, #tpu.memory_space<vmem>>, vector<1x16x256xbf16>
    %7 = vector.shape_cast %6 : vector<1x16x256xbf16> to vector<16x256xbf16>
    %c16 = arith.constant 16 : index
    %c0_10 = arith.constant 0 : index
    %8 = vector.load %arg4[%c16, %c0_10] : memref<256x512xbf16, #tpu.memory_space<vmem>>, vector<16x256xbf16>
    tpu.vector_store %arg4[%c16, %c0_10], %7 {strides = array<i32>} : memref<256x512xbf16, #tpu.memory_space<vmem>>, vector<16x256xbf16>,
    %c1_11 = arith.constant 1 : index
    %c0_12 = arith.constant 0 : index
    %c1_13 = arith.constant 1 : index
    %9 = vector.load %arg1[%c1_11, %c0_12, %c1_13] : memref<2x16x384xbf16, #tpu.memory_space<vmem>>, vector<1x16x256xbf16>
    %10 = vector.shape_cast %9 : vector<1x16x256xbf16> to vector<16x256xbf16>
    %c16_14 = arith.constant 16 : index
    %c256_15 = arith.constant 256 : index
    %11 = vector.load %arg4[%c16_14, %c256_15] : memref<256x512xbf16, #tpu.memory_space<vmem>>, vector<16x256xbf16>
    tpu.vector_store %arg4[%c16_14, %c256_15], %10 {strides = array<i32>} : memref<256x512xbf16, #tpu.memory_space<vmem>>, vector<16x256xbf16>,
    %c0_16 = arith.constant 0 : index
    %c0_17 = arith.constant 0 : index
    %c2 = arith.constant 2 : index
    %12 = vector.load %arg1[%c0_16, %c0_17, %c2] : memref<2x16x384xbf16, #tpu.memory_space<vmem>>, vector<1x16x256xbf16>
    %13 = vector.shape_cast %12 : vector<1x16x256xbf16> to vector<16x256xbf16>
    %c32 = arith.constant 32 : index
    %c0_18 = arith.constant 0 : index
    %14 = vector.load %arg4[%c32, %c0_18] : memref<256x512xbf16, #tpu.memory_space<vmem>>, vector<16x256xbf16>
    tpu.vector_store %arg4[%c32, %c0_18], %13 {strides = array<i32>} : memref<256x512xbf16, #tpu.memory_space<vmem>>, vector<16x256xbf16>,
    %c1_19 = arith.constant 1 : index
    %c0_20 = arith.constant 0 : index
    %c2_21 = arith.constant 2 : index
    %15 = vector.load %arg1[%c1_19, %c0_20, %c2_21] : memref<2x16x384xbf16, #tpu.memory_space<vmem>>, vector<1x16x256xbf16>
    %16 = vector.shape_cast %15 : vector<1x16x256xbf16> to vector<16x256xbf16>
    %c32_22 = arith.constant 32 : index
    %c256_23 = arith.constant 256 : index
    %17 = vector.load %arg4[%c32_22, %c256_23] : memref<256x512xbf16, #tpu.memory_space<vmem>>, vector<16x256xbf16>
    tpu.vector_store %arg4[%c32_22, %c256_23], %16 {strides = array<i32>} : memref<256x512xbf16, #tpu.memory_space<vmem>>, vector<16x256xbf16>,
    %c0_24 = arith.constant 0 : index
    %c0_25 = arith.constant 0 : index
    %c3 = arith.constant 3 : index
    %18 = vector.load %arg1[%c0_24, %c0_25, %c3] : memref<2x16x384xbf16, #tpu.memory_space<vmem>>, vector<1x16x256xbf16>
    %19 = vector.shape_cast %18 : vector<1x16x256xbf16> to vector<16x256xbf16>
    %c48 = arith.constant 48 : index
    %c0_26 = arith.constant 0 : index
    %20 = vector.load %arg4[%c48, %c0_26] : memref<256x512xbf16, #tpu.memory_space<vmem>>, vector<16x256xbf16>
    tpu.vector_store %arg4[%c48, %c0_26], %19 {strides = array<i32>} : memref<256x512xbf16, #tpu.memory_space<vmem>>, vector<16x256xbf16>,
    %c1_27 = arith.constant 1 : index
    %c0_28 = arith.constant 0 : index
    %c3_29 = arith.constant 3 : index
    %21 = vector.load %arg1[%c1_27, %c0_28, %c3_29] : memref<2x16x384xbf16, #tpu.memory_space<vmem>>, vector<1x16x256xbf16>
    %22 = vector.shape_cast %21 : vector<1x16x256xbf16> to vector<16x256xbf16>
    %c48_30 = arith.constant 48 : index
    %c256_31 = arith.constant 256 : index
    %23 = vector.load %arg4[%c48_30, %c256_31] : memref<256x512xbf16, #tpu.memory_space<vmem>>, vector<16x256xbf16>
    tpu.vector_store %arg4[%c48_30, %c256_31], %22 {strides = array<i32>} : memref<256x512xbf16, #tpu.memory_space<vmem>>, vector<16x256xbf16>,
    %c0_32 = arith.constant 0 : index
    %c0_33 = arith.constant 0 : index
    %c16_34 = arith.constant 16 : index
    %24 = vector.load %arg1[%c0_32, %c0_33, %c16_34] : memref<2x16x384xbf16, #tpu.memory_space<vmem>>, vector<1x16x256xbf16>
    %25 = vector.shape_cast %24 : vector<1x16x256xbf16> to vector<16x256xbf16>
    %c64 = arith.constant 64 : index
    %c0_35 = arith.constant 0 : index
    %26 = vector.load %arg4[%c64, %c0_35] : memref<256x512xbf16, #tpu.memory_space<vmem>>, vector<16x256xbf16>
    tpu.vector_store %arg4[%c64, %c0_35], %25 {strides = array<i32>} : memref<256x512xbf16, #tpu.memory_space<vmem>>, vector<16x256xbf16>,
    %c1_36 = arith.constant 1 : index
    %c0_37 = arith.constant 0 : index
    %c16_38 = arith.constant 16 : index
    %27 = vector.load %arg1[%c1_36, %c0_37, %c16_38] : memref<2x16x384xbf16, #tpu.memory_space<vmem>>, vector<1x16x256xbf16>
    %28 = vector.shape_cast %27 : vector<1x16x256xbf16> to vector<16x256xbf16>
    %c64_39 = arith.constant 64 : index
    %c256_40 = arith.constant 256 : index
    %29 = vector.load %arg4[%c64_39, %c256_40] : memref<256x512xbf16, #tpu.memory_space<vmem>>, vector<16x256xbf16>
    tpu.vector_store %arg4[%c64_39, %c256_40], %28 {strides = array<i32>} : memref<256x512xbf16, #tpu.memory_space<vmem>>, vector<16x256xbf16>,
    %c0_41 = arith.constant 0 : index
    %c0_42 = arith.constant 0 : index
    %c17 = arith.constant 17 : index
    %30 = vector.load %arg1[%c0_41, %c0_42, %c17] : memref<2x16x384xbf16, #tpu.memory_space<vmem>>, vector<1x16x256xbf16>
    %31 = vector.shape_cast %30 : vector<1x16x256xbf16> to vector<16x256xbf16>
    %c80 = arith.constant 80 : index
    %c0_43 = arith.constant 0 : index
    %32 = vector.load %arg4[%c80, %c0_43] : memref<256x512xbf16, #tpu.memory_space<vmem>>, vector<16x256xbf16>
    tpu.vector_store %arg4[%c80, %c0_43], %31 {strides = array<i32>} : memref<256x512xbf16, #tpu.memory_space<vmem>>, vector<16x256xbf16>,
    %c1_44 = arith.constant 1 : index
    %c0_45 = arith.constant 0 : index
    %c17_46 = arith.constant 17 : index
    %33 = vector.load %arg1[%c1_44, %c0_45, %c17_46] : memref<2x16x384xbf16, #tpu.memory_space<vmem>>, vector<1x16x256xbf16>
    %34 = vector.shape_cast %33 : vector<1x16x256xbf16> to vector<16x256xbf16>
    %c80_47 = arith.constant 80 : index
    %c256_48 = arith.constant 256 : index
    %35 = vector.load %arg4[%c80_47, %c256_48] : memref<256x512xbf16, #tpu.memory_space<vmem>>, vector<16x256xbf16>
    tpu.vector_store %arg4[%c80_47, %c256_48], %34 {strides = array<i32>} : memref<256x512xbf16, #tpu.memory_space<vmem>>, vector<16x256xbf16>,
    %c0_49 = arith.constant 0 : index
    %c0_50 = arith.constant 0 : index
    %c18 = arith.constant 18 : index
    %36 = vector.load %arg1[%c0_49, %c0_50, %c18] : memref<2x16x384xbf16, #tpu.memory_space<vmem>>, vector<1x16x256xbf16>
    %37 = vector.shape_cast %36 : vector<1x16x256xbf16> to vector<16x256xbf16>
    %c96 = arith.constant 96 : index
    %c0_51 = arith.constant 0 : index
    %38 = vector.load %arg4[%c96, %c0_51] : memref<256x512xbf16, #tpu.memory_space<vmem>>, vector<16x256xbf16>
    tpu.vector_store %arg4[%c96, %c0_51], %37 {strides = array<i32>} : memref<256x512xbf16, #tpu.memory_space<vmem>>, vector<16x256xbf16>,
    %c1_52 = arith.constant 1 : index
    %c0_53 = arith.constant 0 : index
    %c18_54 = arith.constant 18 : index
    %39 = vector.load %arg1[%c1_52, %c0_53, %c18_54] : memref<2x16x384xbf16, #tpu.memory_space<vmem>>, vector<1x16x256xbf16>
    %40 = vector.shape_cast %39 : vector<1x16x256xbf16> to vector<16x256xbf16>
    %c96_55 = arith.constant 96 : index
    %c256_56 = arith.constant 256 : index
    %41 = vector.load %arg4[%c96_55, %c256_56] : memref<256x512xbf16, #tpu.memory_space<vmem>>, vector<16x256xbf16>
    tpu.vector_store %arg4[%c96_55, %c256_56], %40 {strides = array<i32>} : memref<256x512xbf16, #tpu.memory_space<vmem>>, vector<16x256xbf16>,
    %c0_57 = arith.constant 0 : index
    %c0_58 = arith.constant 0 : index
    %c19 = arith.constant 19 : index
    %42 = vector.load %arg1[%c0_57, %c0_58, %c19] : memref<2x16x384xbf16, #tpu.memory_space<vmem>>, vector<1x16x256xbf16>
    %43 = vector.shape_cast %42 : vector<1x16x256xbf16> to vector<16x256xbf16>
    %c112 = arith.constant 112 : index
    %c0_59 = arith.constant 0 : index
    %44 = vector.load %arg4[%c112, %c0_59] : memref<256x512xbf16, #tpu.memory_space<vmem>>, vector<16x256xbf16>
    tpu.vector_store %arg4[%c112, %c0_59], %43 {strides = array<i32>} : memref<256x512xbf16, #tpu.memory_space<vmem>>, vector<16x256xbf16>,
    %c1_60 = arith.constant 1 : index
    %c0_61 = arith.constant 0 : index
    %c19_62 = arith.constant 19 : index
    %45 = vector.load %arg1[%c1_60, %c0_61, %c19_62] : memref<2x16x384xbf16, #tpu.memory_space<vmem>>, vector<1x16x256xbf16>
    %46 = vector.shape_cast %45 : vector<1x16x256xbf16> to vector<16x256xbf16>
    %c112_63 = arith.constant 112 : index
    %c256_64 = arith.constant 256 : index
    %47 = vector.load %arg4[%c112_63, %c256_64] : memref<256x512xbf16, #tpu.memory_space<vmem>>, vector<16x256xbf16>
    tpu.vector_store %arg4[%c112_63, %c256_64], %46 {strides = array<i32>} : memref<256x512xbf16, #tpu.memory_space<vmem>>, vector<16x256xbf16>,
    %c0_65 = arith.constant 0 : index
    %c0_66 = arith.constant 0 : index
    %c32_67 = arith.constant 32 : index
    %48 = vector.load %arg1[%c0_65, %c0_66, %c32_67] : memref<2x16x384xbf16, #tpu.memory_space<vmem>>, vector<1x16x256xbf16>
    %49 = vector.shape_cast %48 : vector<1x16x256xbf16> to vector<16x256xbf16>
    %c128 = arith.constant 128 : index
    %c0_68 = arith.constant 0 : index
    %50 = vector.load %arg4[%c128, %c0_68] : memref<256x512xbf16, #tpu.memory_space<vmem>>, vector<16x256xbf16>
    tpu.vector_store %arg4[%c128, %c0_68], %49 {strides = array<i32>} : memref<256x512xbf16, #tpu.memory_space<vmem>>, vector<16x256xbf16>,
    %c1_69 = arith.constant 1 : index
    %c0_70 = arith.constant 0 : index
    %c32_71 = arith.constant 32 : index
    %51 = vector.load %arg1[%c1_69, %c0_70, %c32_71] : memref<2x16x384xbf16, #tpu.memory_space<vmem>>, vector<1x16x256xbf16>
    %52 = vector.shape_cast %51 : vector<1x16x256xbf16> to vector<16x256xbf16>
    %c128_72 = arith.constant 128 : index
    %c256_73 = arith.constant 256 : index
    %53 = vector.load %arg4[%c128_72, %c256_73] : memref<256x512xbf16, #tpu.memory_space<vmem>>, vector<16x256xbf16>
    tpu.vector_store %arg4[%c128_72, %c256_73], %52 {strides = array<i32>} : memref<256x512xbf16, #tpu.memory_space<vmem>>, vector<16x256xbf16>,
    %c0_74 = arith.constant 0 : index
    %c0_75 = arith.constant 0 : index
    %c33 = arith.constant 33 : index
    %54 = vector.load %arg1[%c0_74, %c0_75, %c33] : memref<2x16x384xbf16, #tpu.memory_space<vmem>>, vector<1x16x256xbf16>
    %55 = vector.shape_cast %54 : vector<1x16x256xbf16> to vector<16x256xbf16>
    %c144 = arith.constant 144 : index
    %c0_76 = arith.constant 0 : index
    %56 = vector.load %arg4[%c144, %c0_76] : memref<256x512xbf16, #tpu.memory_space<vmem>>, vector<16x256xbf16>
    tpu.vector_store %arg4[%c144, %c0_76], %55 {strides = array<i32>} : memref<256x512xbf16, #tpu.memory_space<vmem>>, vector<16x256xbf16>,
    %c1_77 = arith.constant 1 : index
    %c0_78 = arith.constant 0 : index
    %c33_79 = arith.constant 33 : index
    %57 = vector.load %arg1[%c1_77, %c0_78, %c33_79] : memref<2x16x384xbf16, #tpu.memory_space<vmem>>, vector<1x16x256xbf16>
    %58 = vector.shape_cast %57 : vector<1x16x256xbf16> to vector<16x256xbf16>
    %c144_80 = arith.constant 144 : index
    %c256_81 = arith.constant 256 : index
    %59 = vector.load %arg4[%c144_80, %c256_81] : memref<256x512xbf16, #tpu.memory_space<vmem>>, vector<16x256xbf16>
    tpu.vector_store %arg4[%c144_80, %c256_81], %58 {strides = array<i32>} : memref<256x512xbf16, #tpu.memory_space<vmem>>, vector<16x256xbf16>,
    %c0_82 = arith.constant 0 : index
    %c0_83 = arith.constant 0 : index
    %c34 = arith.constant 34 : index
    %60 = vector.load %arg1[%c0_82, %c0_83, %c34] : memref<2x16x384xbf16, #tpu.memory_space<vmem>>, vector<1x16x256xbf16>
    %61 = vector.shape_cast %60 : vector<1x16x256xbf16> to vector<16x256xbf16>
    %c160 = arith.constant 160 : index
    %c0_84 = arith.constant 0 : index
    %62 = vector.load %arg4[%c160, %c0_84] : memref<256x512xbf16, #tpu.memory_space<vmem>>, vector<16x256xbf16>
    tpu.vector_store %arg4[%c160, %c0_84], %61 {strides = array<i32>} : memref<256x512xbf16, #tpu.memory_space<vmem>>, vector<16x256xbf16>,
    %c1_85 = arith.constant 1 : index
    %c0_86 = arith.constant 0 : index
    %c34_87 = arith.constant 34 : index
    %63 = vector.load %arg1[%c1_85, %c0_86, %c34_87] : memref<2x16x384xbf16, #tpu.memory_space<vmem>>, vector<1x16x256xbf16>
    %64 = vector.shape_cast %63 : vector<1x16x256xbf16> to vector<16x256xbf16>
    %c160_88 = arith.constant 160 : index
    %c256_89 = arith.constant 256 : index
    %65 = vector.load %arg4[%c160_88, %c256_89] : memref<256x512xbf16, #tpu.memory_space<vmem>>, vector<16x256xbf16>
    tpu.vector_store %arg4[%c160_88, %c256_89], %64 {strides = array<i32>} : memref<256x512xbf16, #tpu.memory_space<vmem>>, vector<16x256xbf16>,
    %c0_90 = arith.constant 0 : index
    %c0_91 = arith.constant 0 : index
    %c35 = arith.constant 35 : index
    %66 = vector.load %arg1[%c0_90, %c0_91, %c35] : memref<2x16x384xbf16, #tpu.memory_space<vmem>>, vector<1x16x256xbf16>
    %67 = vector.shape_cast %66 : vector<1x16x256xbf16> to vector<16x256xbf16>
    %c176 = arith.constant 176 : index
    %c0_92 = arith.constant 0 : index
    %68 = vector.load %arg4[%c176, %c0_92] : memref<256x512xbf16, #tpu.memory_space<vmem>>, vector<16x256xbf16>
    tpu.vector_store %arg4[%c176, %c0_92], %67 {strides = array<i32>} : memref<256x512xbf16, #tpu.memory_space<vmem>>, vector<16x256xbf16>,
    %c1_93 = arith.constant 1 : index
    %c0_94 = arith.constant 0 : index
    %c35_95 = arith.constant 35 : index
    %69 = vector.load %arg1[%c1_93, %c0_94, %c35_95] : memref<2x16x384xbf16, #tpu.memory_space<vmem>>, vector<1x16x256xbf16>
    %70 = vector.shape_cast %69 : vector<1x16x256xbf16> to vector<16x256xbf16>
    %c176_96 = arith.constant 176 : index
    %c256_97 = arith.constant 256 : index
    %71 = vector.load %arg4[%c176_96, %c256_97] : memref<256x512xbf16, #tpu.memory_space<vmem>>, vector<16x256xbf16>
    tpu.vector_store %arg4[%c176_96, %c256_97], %70 {strides = array<i32>} : memref<256x512xbf16, #tpu.memory_space<vmem>>, vector<16x256xbf16>,
    %c0_98 = arith.constant 0 : index
    %c0_99 = arith.constant 0 : index
    %c48_100 = arith.constant 48 : index
    %72 = vector.load %arg1[%c0_98, %c0_99, %c48_100] : memref<2x16x384xbf16, #tpu.memory_space<vmem>>, vector<1x16x256xbf16>
    %73 = vector.shape_cast %72 : vector<1x16x256xbf16> to vector<16x256xbf16>
    %c192 = arith.constant 192 : index
    %c0_101 = arith.constant 0 : index
    %74 = vector.load %arg4[%c192, %c0_101] : memref<256x512xbf16, #tpu.memory_space<vmem>>, vector<16x256xbf16>
    tpu.vector_store %arg4[%c192, %c0_101], %73 {strides = array<i32>} : memref<256x512xbf16, #tpu.memory_space<vmem>>, vector<16x256xbf16>,
    %c1_102 = arith.constant 1 : index
    %c0_103 = arith.constant 0 : index
    %c48_104 = arith.constant 48 : index
    %75 = vector.load %arg1[%c1_102, %c0_103, %c48_104] : memref<2x16x384xbf16, #tpu.memory_space<vmem>>, vector<1x16x256xbf16>
    %76 = vector.shape_cast %75 : vector<1x16x256xbf16> to vector<16x256xbf16>
    %c192_105 = arith.constant 192 : index
    %c256_106 = arith.constant 256 : index
    %77 = vector.load %arg4[%c192_105, %c256_106] : memref<256x512xbf16, #tpu.memory_space<vmem>>, vector<16x256xbf16>
    tpu.vector_store %arg4[%c192_105, %c256_106], %76 {strides = array<i32>} : memref<256x512xbf16, #tpu.memory_space<vmem>>, vector<16x256xbf16>,
    %c0_107 = arith.constant 0 : index
    %c0_108 = arith.constant 0 : index
    %c49 = arith.constant 49 : index
    %78 = vector.load %arg1[%c0_107, %c0_108, %c49] : memref<2x16x384xbf16, #tpu.memory_space<vmem>>, vector<1x16x256xbf16>
    %79 = vector.shape_cast %78 : vector<1x16x256xbf16> to vector<16x256xbf16>
    %c208 = arith.constant 208 : index
    %c0_109 = arith.constant 0 : index
    %80 = vector.load %arg4[%c208, %c0_109] : memref<256x512xbf16, #tpu.memory_space<vmem>>, vector<16x256xbf16>
    tpu.vector_store %arg4[%c208, %c0_109], %79 {strides = array<i32>} : memref<256x512xbf16, #tpu.memory_space<vmem>>, vector<16x256xbf16>,
    %c1_110 = arith.constant 1 : index
    %c0_111 = arith.constant 0 : index
    %c49_112 = arith.constant 49 : index
    %81 = vector.load %arg1[%c1_110, %c0_111, %c49_112] : memref<2x16x384xbf16, #tpu.memory_space<vmem>>, vector<1x16x256xbf16>
    %82 = vector.shape_cast %81 : vector<1x16x256xbf16> to vector<16x256xbf16>
    %c208_113 = arith.constant 208 : index
    %c256_114 = arith.constant 256 : index
    %83 = vector.load %arg4[%c208_113, %c256_114] : memref<256x512xbf16, #tpu.memory_space<vmem>>, vector<16x256xbf16>
    tpu.vector_store %arg4[%c208_113, %c256_114], %82 {strides = array<i32>} : memref<256x512xbf16, #tpu.memory_space<vmem>>, vector<16x256xbf16>,
    %c0_115 = arith.constant 0 : index
    %c0_116 = arith.constant 0 : index
    %c50 = arith.constant 50 : index
    %84 = vector.load %arg1[%c0_115, %c0_116, %c50] : memref<2x16x384xbf16, #tpu.memory_space<vmem>>, vector<1x16x256xbf16>
    %85 = vector.shape_cast %84 : vector<1x16x256xbf16> to vector<16x256xbf16>
    %c224 = arith.constant 224 : index
    %c0_117 = arith.constant 0 : index
    %86 = vector.load %arg4[%c224, %c0_117] : memref<256x512xbf16, #tpu.memory_space<vmem>>, vector<16x256xbf16>
    tpu.vector_store %arg4[%c224, %c0_117], %85 {strides = array<i32>} : memref<256x512xbf16, #tpu.memory_space<vmem>>, vector<16x256xbf16>,
    %c1_118 = arith.constant 1 : index
    %c0_119 = arith.constant 0 : index
    %c50_120 = arith.constant 50 : index
    %87 = vector.load %arg1[%c1_118, %c0_119, %c50_120] : memref<2x16x384xbf16, #tpu.memory_space<vmem>>, vector<1x16x256xbf16>
    %88 = vector.shape_cast %87 : vector<1x16x256xbf16> to vector<16x256xbf16>
    %c224_121 = arith.constant 224 : index
    %c256_122 = arith.constant 256 : index
    %89 = vector.load %arg4[%c224_121, %c256_122] : memref<256x512xbf16, #tpu.memory_space<vmem>>, vector<16x256xbf16>
    tpu.vector_store %arg4[%c224_121, %c256_122], %88 {strides = array<i32>} : memref<256x512xbf16, #tpu.memory_space<vmem>>, vector<16x256xbf16>,
    %c0_123 = arith.constant 0 : index
    %c0_124 = arith.constant 0 : index
    %c51 = arith.constant 51 : index
    %90 = vector.load %arg1[%c0_123, %c0_124, %c51] : memref<2x16x384xbf16, #tpu.memory_space<vmem>>, vector<1x16x256xbf16>
    %91 = vector.shape_cast %90 : vector<1x16x256xbf16> to vector<16x256xbf16>
    %c240 = arith.constant 240 : index
    %c0_125 = arith.constant 0 : index
    %92 = vector.load %arg4[%c240, %c0_125] : memref<256x512xbf16, #tpu.memory_space<vmem>>, vector<16x256xbf16>
    tpu.vector_store %arg4[%c240, %c0_125], %91 {strides = array<i32>} : memref<256x512xbf16, #tpu.memory_space<vmem>>, vector<16x256xbf16>,
    %c1_126 = arith.constant 1 : index
    %c0_127 = arith.constant 0 : index
    %c51_128 = arith.constant 51 : index
    %93 = vector.load %arg1[%c1_126, %c0_127, %c51_128] : memref<2x16x384xbf16, #tpu.memory_space<vmem>>, vector<1x16x256xbf16>
    %94 = vector.shape_cast %93 : vector<1x16x256xbf16> to vector<16x256xbf16>
    %c240_129 = arith.constant 240 : index
    %c256_130 = arith.constant 256 : index
    %95 = vector.load %arg4[%c240_129, %c256_130] : memref<256x512xbf16, #tpu.memory_space<vmem>>, vector<16x256xbf16>
    tpu.vector_store %arg4[%c240_129, %c256_130], %94 {strides = array<i32>} : memref<256x512xbf16, #tpu.memory_space<vmem>>, vector<16x256xbf16>,
    %c0_131 = arith.constant 0 : index
    %c0_132 = arith.constant 0 : index
    %96 = vector.load %arg2[%c0_131, %c0_132] : memref<32x256xbf16, #tpu.memory_space<vmem>>, vector<32x256xbf16>
    %c0_133 = arith.constant 0 : index
    %c0_134 = arith.constant 0 : index
    %97 = vector.load %arg4[%c0_133, %c0_134] : memref<256x512xbf16, #tpu.memory_space<vmem>>, vector<256x512xbf16>
    %cst = arith.constant dense<0.000000e+00> : vector<32x512xf32>
    %98 = tpu.matmul %96, %97, %cst {dimension_numbers = #tpu.dot_dimension_numbers<[1], [0], [0], [1], [0, 0, 1, 1], [], []>} : vector<32x256xbf16>, vector<256x512xbf16>, vector<32x512xf32> -> vector<32x512xf32>
    %cst_135 = arith.constant 0.000000e+00 : f32
    %99 = vector.broadcast %cst_135 : f32 to vector<32x512xf32>
    %100 = arith.cmpf ogt, %98, %99 : vector<32x512xf32>
    %cst_136 = arith.constant 5.350600e+00 : f32
    %101 = vector.broadcast %cst_136 : f32 to vector<32x512xf32>
    %102 = arith.mulf %98, %101 : vector<32x512xf32>
    %103 = arith.select %100, %98, %102 : vector<32x512xi1>, vector<32x512xf32>
    %104 = vector.extract_strided_slice %103 {offsets = [0, 0], sizes = [32, 256], strides = [1, 1]} : vector<32x512xf32> to vector<32x256xf32>
    %c0_137 = arith.constant 0 : index
    %c0_138 = arith.constant 0 : index
    %c0_139 = arith.constant 0 : index
    %105 = vector.load %arg3[%c0_137, %c0_138, %c0_139] : memref<2x32x256xf32, #tpu.memory_space<vmem>>, vector<1x32x256xf32>
    %106 = vector.shape_cast %105 : vector<1x32x256xf32> to vector<32x256xf32>
    %107 = vector.shape_cast %104 : vector<32x256xf32> to vector<1x32x256xf32>
    tpu.vector_store %arg3[%c0_137, %c0_138, %c0_139], %107 {strides = array<i32>} : memref<2x32x256xf32, #tpu.memory_space<vmem>>, vector<1x32x256xf32>,
    %108 = vector.extract_strided_slice %103 {offsets = [0, 256], sizes = [32, 256], strides = [1, 1]} : vector<32x512xf32> to vector<32x256xf32>
    %c1_140 = arith.constant 1 : index
    %c0_141 = arith.constant 0 : index
    %c0_142 = arith.constant 0 : index
    %109 = vector.load %arg3[%c1_140, %c0_141, %c0_142] : memref<2x32x256xf32, #tpu.memory_space<vmem>>, vector<1x32x256xf32>
    %110 = vector.shape_cast %109 : vector<1x32x256xf32> to vector<32x256xf32>
    %111 = vector.shape_cast %108 : vector<32x256xf32> to vector<1x32x256xf32>
    tpu.vector_store %arg3[%c1_140, %c0_141, %c0_142], %111 {strides = array<i32>} : memref<2x32x256xf32, #tpu.memory_space<vmem>>, vector<1x32x256xf32>,
    return
  }
  func.func @transform_0(%arg0: i32) -> (i32, i32, i32) {
    %c0_i32 = arith.constant 0 : i32
    %c0_i32_0 = arith.constant 0 : i32
    %c0_i32_1 = arith.constant 0 : i32
    %c0_i32_2 = arith.constant 0 : i32
    return %c0_i32, %c0_i32_0, %c0_i32_1 : i32, i32, i32
  }
  func.func @transform_1(%arg0: i32) -> (i32, i32) {
    %c0_i32 = arith.constant 0 : i32
    %c0_i32_0 = arith.constant 0 : i32
    %c0_i32_1 = arith.constant 0 : i32
    return %c0_i32, %c0_i32_0 : i32, i32
  }
  func.func @transform_2(%arg0: i32) -> (i32, i32, i32) {
    %c0_i32 = arith.constant 0 : i32
    %c0_i32_0 = arith.constant 0 : i32
    %c0_i32_1 = arith.constant 0 : i32
    %c0_i32_2 = arith.constant 0 : i32
    return %c0_i32, %c0_i32_0, %c0_i32_1 : i32, i32, i32
  }
}

</mosaic_0001>

<llo_original>
// kernel: conv_transpose_model.1
$region0: #{conv_transpose_model.1}
  #allocation0 [shape = 'u32[]', space=smem, size = 0x4, offset = 0x4, fixed_abs, tag = 'smem constant byte address 0x4 - core index']
  #allocation1 [shape = 'u32[144,128]{1,0:T(1,128)}', space=vmem, size = 0x12000, scoped, tag = 'internal scratch']
  #allocation2 [shape = 'bf16[256,512]{1,0:T(16,128)(2,1)}', space=vmem, size = 0x40000, scoped, tag = 'scratch operand']
  %s0 = inlined_call_operand.vmem [shape: bf16[2,16,384], index: 0, kind: input, shape index: {}]
  %s1 = inlined_call_operand.vmem [shape: bf16[32,256], index: 1, kind: input, shape index: {}]
  %s2 = inlined_call_operand.vmem [shape: f32[2,32,256], index: 2, kind: output, shape index: {}]
  %s3 = sld [smem:[#allocation0]]
  $region18: #{conv_transpose_model.1} parent=0
    _
  %s5 = ssub.s32 1, %s3
  %s6 = scalar_select 0, %s5, %s3
  // Predicated region
  $region2: #{conv_transpose_model.1} parent=0 // pred_check
    _
  $region3: #{conv_transpose_model.1} parent=0 // pred_check_branch
    %8 = sbr.rel (0) target = $region5
  $region4: #{conv_transpose_model.1} parent=0 // pred_region
    _
  $region5: #{conv_transpose_model.1} parent=0 // pred_fallthru
    _
  // Predicated region
  $region6: #{conv_transpose_model.1} parent=0 // pred_check
    _
  $region7: #{conv_transpose_model.1} parent=0 // pred_check_branch
    %10 = sbr.rel (0) target = $region9
  $region8: #{conv_transpose_model.1} parent=0 // pred_region
    _
  $region9: #{conv_transpose_model.1} parent=0 // pred_fallthru
    _
  %v11 = vld [vmem:[%s0] sm:$0xff]
  %v12 = vld [vmem:[%s0 + $0xc] sm:$0xff]
  %v15 = vunpack.c.l.b16 %v11
  %v16 = vunpack.c.h.b16 %v11
  %v17 = vunpack.c.l.b16 %v12
  %v18 = vunpack.c.h.b16 %v12
  %v19 = vpack.c.b16 %v17, %v15
  %v20 = vpack.c.b16 %v18, %v16
  %23 = vst [vmem:[#allocation2] sm:$0xff] %v19
  %24 = vst [vmem:[#allocation2 + $0x8] sm:$0xff] %v20
  %s25 = scalar_lea.vmem %s0, 24
  %v26 = vld [vmem:[%s25] sm:$0xff]
  %v27 = vld [vmem:[%s25 + $0xc] sm:$0xff]
  %v30 = vunpack.c.l.b16 %v26
  %v31 = vunpack.c.h.b16 %v26
  %v32 = vunpack.c.l.b16 %v27
  %v33 = vunpack.c.h.b16 %v27
  %v34 = vpack.c.b16 %v32, %v30
  %v35 = vpack.c.b16 %v33, %v31
  %38 = vst [vmem:[#allocation2 + $0x10] sm:$0xff] %v34
  %39 = vst [vmem:[#allocation2 + $0x18] sm:$0xff] %v35
  %v40 = vld [vmem:[%s0] sm:$0xff]
  %v41 = vld [vmem:[%s0 + $0x8] sm:$0xf]
  %v42 = vld [vmem:[%s0 + $0xc] sm:$0xff]
  %v43 = vld [vmem:[%s0 + $0x14] sm:$0xf]
  %v48 = vunpack.c.l.b16 %v40
  %v49 = vunpack.c.h.b16 %v40
  %v50 = vunpack.c.l.b16 %v41
  %v51 = vunpack.c.l.b16 %v42
  %v52 = vunpack.c.h.b16 %v42
  %v53 = vunpack.c.l.b16 %v43
  %v54 = vpack.c.b16 %v51, %v48
  %v55 = vpack.c.b16 %v52, %v49
  %v56 = vpack.c.b16 %v53, %v50
  %57 = vrot.lane.b32.xlu0 %v54, 127
  %v58 = vpop.permute.xlu0 %57
  %59 = vrot.lane.b32.xlu0 %v55, 127
  %v60 = vpop.permute.xlu0 %59
  %61 = vrot.lane.b32.xlu0 %v56, 127
  %v62 = vpop.permute.xlu0 %61
  %vm63 = vcmask 1039360
  %v64 = vsel %vm63, %v58, %v60
  %v65 = vsel %vm63, %v60, %v62
  %68 = vst [vmem:[#allocation2 + $0x20] sm:$0xff] %v64
  %69 = vst [vmem:[#allocation2 + $0x28] sm:$0xff] %v65
  %v70 = vld [vmem:[%s25] sm:$0xff]
  %v71 = vld [vmem:[%s25 + $0x8] sm:$0xf]
  %v72 = vld [vmem:[%s25 + $0xc] sm:$0xff]
  %v73 = vld [vmem:[%s25 + $0x14] sm:$0xf]
  %v78 = vunpack.c.l.b16 %v70
  %v79 = vunpack.c.h.b16 %v70
  %v80 = vunpack.c.l.b16 %v71
  %v81 = vunpack.c.l.b16 %v72
  %v82 = vunpack.c.h.b16 %v72
  %v83 = vunpack.c.l.b16 %v73
  %v84 = vpack.c.b16 %v81, %v78
  %v85 = vpack.c.b16 %v82, %v79
  %v86 = vpack.c.b16 %v83, %v80
  %87 = vrot.lane.b32.xlu0 %v84, 127
  %v88 = vpop.permute.xlu0 %87
  %89 = vrot.lane.b32.xlu0 %v85, 127
  %v90 = vpop.permute.xlu0 %89
  %91 = vrot.lane.b32.xlu0 %v86, 127
  %v92 = vpop.permute.xlu0 %91
  %v93 = vsel %vm63, %v88, %v90
  %v94 = vsel %vm63, %v90, %v92
  %97 = vst [vmem:[#allocation2 + $0x30] sm:$0xff] %v93
  %98 = vst [vmem:[#allocation2 + $0x38] sm:$0xff] %v94
  %v99 = vld [vmem:[%s0] sm:$0xff]
  %v100 = vld [vmem:[%s0 + $0x8] sm:$0xf]
  %v101 = vld [vmem:[%s0 + $0xc] sm:$0xff]
  %v102 = vld [vmem:[%s0 + $0x14] sm:$0xf]
  %v107 = vunpack.c.l.b16 %v99
  %v108 = vunpack.c.h.b16 %v99
  %v109 = vunpack.c.l.b16 %v100
  %v110 = vunpack.c.l.b16 %v101
  %v111 = vunpack.c.h.b16 %v101
  %v112 = vunpack.c.l.b16 %v102
  %v113 = vpack.c.b16 %v110, %v107
  %v114 = vpack.c.b16 %v111, %v108
  %v115 = vpack.c.b16 %v112, %v109
  %116 = vrot.lane.b32.xlu0 %v113, 126
  %v117 = vpop.permute.xlu0 %116
  %118 = vrot.lane.b32.xlu0 %v114, 126
  %v119 = vpop.permute.xlu0 %118
  %120 = vrot.lane.b32.xlu0 %v115, 126
  %v121 = vpop.permute.xlu0 %120
  %vm122 = vcmask 1031168
  %v123 = vsel %vm122, %v117, %v119
  %v124 = vsel %vm122, %v119, %v121
  %127 = vst [vmem:[#allocation2 + $0x40] sm:$0xff] %v123
  %128 = vst [vmem:[#allocation2 + $0x48] sm:$0xff] %v124
  %v129 = vld [vmem:[%s25] sm:$0xff]
  %v130 = vld [vmem:[%s25 + $0x8] sm:$0xf]
  %v131 = vld [vmem:[%s25 + $0xc] sm:$0xff]
  %v132 = vld [vmem:[%s25 + $0x14] sm:$0xf]
  %v137 = vunpack.c.l.b16 %v129
  %v138 = vunpack.c.h.b16 %v129
  %v139 = vunpack.c.l.b16 %v130
  %v140 = vunpack.c.l.b16 %v131
  %v141 = vunpack.c.h.b16 %v131
  %v142 = vunpack.c.l.b16 %v132
  %v143 = vpack.c.b16 %v140, %v137
  %v144 = vpack.c.b16 %v141, %v138
  %v145 = vpack.c.b16 %v142, %v139
  %146 = vrot.lane.b32.xlu0 %v143, 126
  %v147 = vpop.permute.xlu0 %146
  %148 = vrot.lane.b32.xlu0 %v144, 126
  %v149 = vpop.permute.xlu0 %148
  %150 = vrot.lane.b32.xlu0 %v145, 126
  %v151 = vpop.permute.xlu0 %150
  %v152 = vsel %vm122, %v147, %v149
  %v153 = vsel %vm122, %v149, %v151
  %156 = vst [vmem:[#allocation2 + $0x50] sm:$0xff] %v152
  %157 = vst [vmem:[#allocation2 + $0x58] sm:$0xff] %v153
  %v158 = vld [vmem:[%s0] sm:$0xff]
  %v159 = vld [vmem:[%s0 + $0x8] sm:$0xf]
  %v160 = vld [vmem:[%s0 + $0xc] sm:$0xff]
  %v161 = vld [vmem:[%s0 + $0x14] sm:$0xf]
  %v166 = vunpack.c.l.b16 %v158
  %v167 = vunpack.c.h.b16 %v158
  %v168 = vunpack.c.l.b16 %v159
  %v169 = vunpack.c.l.b16 %v160
  %v170 = vunpack.c.h.b16 %v160
  %v171 = vunpack.c.l.b16 %v161
  %v172 = vpack.c.b16 %v169, %v166
  %v173 = vpack.c.b16 %v170, %v167
  %v174 = vpack.c.b16 %v171, %v168
  %175 = vrot.lane.b32.xlu0 %v172, 125
  %v176 = vpop.permute.xlu0 %175
  %177 = vrot.lane.b32.xlu0 %v173, 125
  %v178 = vpop.permute.xlu0 %177
  %179 = vrot.lane.b32.xlu0 %v174, 125
  %v180 = vpop.permute.xlu0 %179
  %vm181 = vcmask 1022976
  %v182 = vsel %vm181, %v176, %v178
  %v183 = vsel %vm181, %v178, %v180
  %186 = vst [vmem:[#allocation2 + $0x60] sm:$0xff] %v182
  %187 = vst [vmem:[#allocation2 + $0x68] sm:$0xff] %v183
  %v188 = vld [vmem:[%s25] sm:$0xff]
  %v189 = vld [vmem:[%s25 + $0x8] sm:$0xf]
  %v190 = vld [vmem:[%s25 + $0xc] sm:$0xff]
  %v191 = vld [vmem:[%s25 + $0x14] sm:$0xf]
  %v196 = vunpack.c.l.b16 %v188
  %v197 = vunpack.c.h.b16 %v188
  %v198 = vunpack.c.l.b16 %v189
  %v199 = vunpack.c.l.b16 %v190
  %v200 = vunpack.c.h.b16 %v190
  %v201 = vunpack.c.l.b16 %v191
  %v202 = vpack.c.b16 %v199, %v196
  %v203 = vpack.c.b16 %v200, %v197
  %v204 = vpack.c.b16 %v201, %v198
  %205 = vrot.lane.b32.xlu0 %v202, 125
  %v206 = vpop.permute.xlu0 %205
  %207 = vrot.lane.b32.xlu0 %v203, 125
  %v208 = vpop.permute.xlu0 %207
  %209 = vrot.lane.b32.xlu0 %v204, 125
  %v210 = vpop.permute.xlu0 %209
  %v211 = vsel %vm181, %v206, %v208
  %v212 = vsel %vm181, %v208, %v210
  %215 = vst [vmem:[#allocation2 + $0x70] sm:$0xff] %v211
  %216 = vst [vmem:[#allocation2 + $0x78] sm:$0xff] %v212
  %v217 = vld [vmem:[%s0] sm:$0xff]
  %v218 = vld [vmem:[%s0 + $0x8] sm:$0xf]
  %v219 = vld [vmem:[%s0 + $0xc] sm:$0xff]
  %v220 = vld [vmem:[%s0 + $0x14] sm:$0xf]
  %v225 = vunpack.c.l.b16 %v217
  %v226 = vunpack.c.h.b16 %v217
  %v227 = vunpack.c.l.b16 %v218
  %v228 = vunpack.c.l.b16 %v219
  %v229 = vunpack.c.h.b16 %v219
  %v230 = vunpack.c.l.b16 %v220
  %v231 = vpack.c.b16 %v228, %v225
  %v232 = vpack.c.b16 %v229, %v226
  %v233 = vpack.c.b16 %v230, %v227
  %234 = vrot.lane.b32.xlu0 %v231, 112
  %v235 = vpop.permute.xlu0 %234
  %236 = vrot.lane.b32.xlu0 %v232, 112
  %v237 = vpop.permute.xlu0 %236
  %238 = vrot.lane.b32.xlu0 %v233, 112
  %v239 = vpop.permute.xlu0 %238
  %vm240 = vcmask 916480
  %v241 = vsel %vm240, %v235, %v237
  %v242 = vsel %vm240, %v237, %v239
  %245 = vst [vmem:[#allocation2 + $0x80] sm:$0xff] %v241
  %246 = vst [vmem:[#allocation2 + $0x88] sm:$0xff] %v242
  %v247 = vld [vmem:[%s25] sm:$0xff]
  %v248 = vld [vmem:[%s25 + $0x8] sm:$0xf]
  %v249 = vld [vmem:[%s25 + $0xc] sm:$0xff]
  %v250 = vld [vmem:[%s25 + $0x14] sm:$0xf]
  %v255 = vunpack.c.l.b16 %v247
  %v256 = vunpack.c.h.b16 %v247
  %v257 = vunpack.c.l.b16 %v248
  %v258 = vunpack.c.l.b16 %v249
  %v259 = vunpack.c.h.b16 %v249
  %v260 = vunpack.c.l.b16 %v250
  %v261 = vpack.c.b16 %v258, %v255
  %v262 = vpack.c.b16 %v259, %v256
  %v263 = vpack.c.b16 %v260, %v257
  %264 = vrot.lane.b32.xlu0 %v261, 112
  %v265 = vpop.permute.xlu0 %264
  %266 = vrot.lane.b32.xlu0 %v262, 112
  %v267 = vpop.permute.xlu0 %266
  %268 = vrot.lane.b32.xlu0 %v263, 112
  %v269 = vpop.permute.xlu0 %268
  %v270 = vsel %vm240, %v265, %v267
  %v271 = vsel %vm240, %v267, %v269
  %274 = vst [vmem:[#allocation2 + $0x90] sm:$0xff] %v270
  %275 = vst [vmem:[#allocation2 + $0x98] sm:$0xff] %v271
  %v276 = vld [vmem:[%s0] sm:$0xff]
  %v277 = vld [vmem:[%s0 + $0x8] sm:$0xf]
  %v278 = vld [vmem:[%s0 + $0xc] sm:$0xff]
  %v279 = vld [vmem:[%s0 + $0x14] sm:$0xf]
  %v284 = vunpack.c.l.b16 %v276
  %v285 = vunpack.c.h.b16 %v276
  %v286 = vunpack.c.l.b16 %v277
  %v287 = vunpack.c.l.b16 %v278
  %v288 = vunpack.c.h.b16 %v278
  %v289 = vunpack.c.l.b16 %v279
  %v290 = vpack.c.b16 %v287, %v284
  %v291 = vpack.c.b16 %v288, %v285
  %v292 = vpack.c.b16 %v289, %v286
  %293 = vrot.lane.b32.xlu0 %v290, 111
  %v294 = vpop.permute.xlu0 %293
  %295 = vrot.lane.b32.xlu0 %v291, 111
  %v296 = vpop.permute.xlu0 %295
  %297 = vrot.lane.b32.xlu0 %v292, 111
  %v298 = vpop.permute.xlu0 %297
  %vm299 = vcmask 908288
  %v300 = vsel %vm299, %v294, %v296
  %v301 = vsel %vm299, %v296, %v298
  %304 = vst [vmem:[#allocation2 + $0xa0] sm:$0xff] %v300
  %305 = vst [vmem:[#allocation2 + $0xa8] sm:$0xff] %v301
  %v306 = vld [vmem:[%s25] sm:$0xff]
  %v307 = vld [vmem:[%s25 + $0x8] sm:$0xf]
  %v308 = vld [vmem:[%s25 + $0xc] sm:$0xff]
  %v309 = vld [vmem:[%s25 + $0x14] sm:$0xf]
  %v314 = vunpack.c.l.b16 %v306
  %v315 = vunpack.c.h.b16 %v306
  %v316 = vunpack.c.l.b16 %v307
  %v317 = vunpack.c.l.b16 %v308
  %v318 = vunpack.c.h.b16 %v308
  %v319 = vunpack.c.l.b16 %v309
  %v320 = vpack.c.b16 %v317, %v314
  %v321 = vpack.c.b16 %v318, %v315
  %v322 = vpack.c.b16 %v319, %v316
  %323 = vrot.lane.b32.xlu0 %v320, 111
  %v324 = vpop.permute.xlu0 %323
  %325 = vrot.lane.b32.xlu0 %v321, 111
  %v326 = vpop.permute.xlu0 %325
  %327 = vrot.lane.b32.xlu0 %v322, 111
  %v328 = vpop.permute.xlu0 %327
  %v329 = vsel %vm299, %v324, %v326
  %v330 = vsel %vm299, %v326, %v328
  %333 = vst [vmem:[#allocation2 + $0xb0] sm:$0xff] %v329
  %334 = vst [vmem:[#allocation2 + $0xb8] sm:$0xff] %v330
  %v335 = vld [vmem:[%s0] sm:$0xff]
  %v336 = vld [vmem:[%s0 + $0x8] sm:$0xf]
  %v337 = vld [vmem:[%s0 + $0xc] sm:$0xff]
  %v338 = vld [vmem:[%s0 + $0x14] sm:$0xf]
  %v343 = vunpack.c.l.b16 %v335
  %v344 = vunpack.c.h.b16 %v335
  %v345 = vunpack.c.l.b16 %v336
  %v346 = vunpack.c.l.b16 %v337
  %v347 = vunpack.c.h.b16 %v337
  %v348 = vunpack.c.l.b16 %v338
  %v349 = vpack.c.b16 %v346, %v343
  %v350 = vpack.c.b16 %v347, %v344
  %v351 = vpack.c.b16 %v348, %v345
  %352 = vrot.lane.b32.xlu0 %v349, 110
  %v353 = vpop.permute.xlu0 %352
  %354 = vrot.lane.b32.xlu0 %v350, 110
  %v355 = vpop.permute.xlu0 %354
  %356 = vrot.lane.b32.xlu0 %v351, 110
  %v357 = vpop.permute.xlu0 %356
  %vm358 = vcmask 900096
  %v359 = vsel %vm358, %v353, %v355
  %v360 = vsel %vm358, %v355, %v357
  %363 = vst [vmem:[#allocation2 + $0xc0] sm:$0xff] %v359
  %364 = vst [vmem:[#allocation2 + $0xc8] sm:$0xff] %v360
  %v365 = vld [vmem:[%s25] sm:$0xff]
  %v366 = vld [vmem:[%s25 + $0x8] sm:$0xf]
  %v367 = vld [vmem:[%s25 + $0xc] sm:$0xff]
  %v368 = vld [vmem:[%s25 + $0x14] sm:$0xf]
  %v373 = vunpack.c.l.b16 %v365
  %v374 = vunpack.c.h.b16 %v365
  %v375 = vunpack.c.l.b16 %v366
  %v376 = vunpack.c.l.b16 %v367
  %v377 = vunpack.c.h.b16 %v367
  %v378 = vunpack.c.l.b16 %v368
  %v379 = vpack.c.b16 %v376, %v373
  %v380 = vpack.c.b16 %v377, %v374
  %v381 = vpack.c.b16 %v378, %v375
  %382 = vrot.lane.b32.xlu0 %v379, 110
  %v383 = vpop.permute.xlu0 %382
  %384 = vrot.lane.b32.xlu0 %v380, 110
  %v385 = vpop.permute.xlu0 %384
  %386 = vrot.lane.b32.xlu0 %v381, 110
  %v387 = vpop.permute.xlu0 %386
  %v388 = vsel %vm358, %v383, %v385
  %v389 = vsel %vm358, %v385, %v387
  %392 = vst [vmem:[#allocation2 + $0xd0] sm:$0xff] %v388
  %393 = vst [vmem:[#allocation2 + $0xd8] sm:$0xff] %v389
  %v394 = vld [vmem:[%s0] sm:$0xff]
  %v395 = vld [vmem:[%s0 + $0x8] sm:$0xf]
  %v396 = vld [vmem:[%s0 + $0xc] sm:$0xff]
  %v397 = vld [vmem:[%s0 + $0x14] sm:$0xf]
  %v402 = vunpack.c.l.b16 %v394
  %v403 = vunpack.c.h.b16 %v394
  %v404 = vunpack.c.l.b16 %v395
  %v405 = vunpack.c.l.b16 %v396
  %v406 = vunpack.c.h.b16 %v396
  %v407 = vunpack.c.l.b16 %v397
  %v408 = vpack.c.b16 %v405, %v402
  %v409 = vpack.c.b16 %v406, %v403
  %v410 = vpack.c.b16 %v407, %v404
  %411 = vrot.lane.b32.xlu0 %v408, 109
  %v412 = vpop.permute.xlu0 %411
  %413 = vrot.lane.b32.xlu0 %v409, 109
  %v414 = vpop.permute.xlu0 %413
  %415 = vrot.lane.b32.xlu0 %v410, 109
  %v416 = vpop.permute.xlu0 %415
  %vm417 = vcmask 891904
  %v418 = vsel %vm417, %v412, %v414
  %v419 = vsel %vm417, %v414, %v416
  %422 = vst [vmem:[#allocation2 + $0xe0] sm:$0xff] %v418
  %423 = vst [vmem:[#allocation2 + $0xe8] sm:$0xff] %v419
  %v424 = vld [vmem:[%s25] sm:$0xff]
  %v425 = vld [vmem:[%s25 + $0x8] sm:$0xf]
  %v426 = vld [vmem:[%s25 + $0xc] sm:$0xff]
  %v427 = vld [vmem:[%s25 + $0x14] sm:$0xf]
  %v432 = vunpack.c.l.b16 %v424
  %v433 = vunpack.c.h.b16 %v424
  %v434 = vunpack.c.l.b16 %v425
  %v435 = vunpack.c.l.b16 %v426
  %v436 = vunpack.c.h.b16 %v426
  %v437 = vunpack.c.l.b16 %v427
  %v438 = vpack.c.b16 %v435, %v432
  %v439 = vpack.c.b16 %v436, %v433
  %v440 = vpack.c.b16 %v437, %v434
  %441 = vrot.lane.b32.xlu0 %v438, 109
  %v442 = vpop.permute.xlu0 %441
  %443 = vrot.lane.b32.xlu0 %v439, 109
  %v444 = vpop.permute.xlu0 %443
  %445 = vrot.lane.b32.xlu0 %v440, 109
  %v446 = vpop.permute.xlu0 %445
  %v447 = vsel %vm417, %v442, %v444
  %v448 = vsel %vm417, %v444, %v446
  %451 = vst [vmem:[#allocation2 + $0xf0] sm:$0xff] %v447
  %452 = vst [vmem:[#allocation2 + $0xf8] sm:$0xff] %v448
  %v453 = vld [vmem:[%s0] sm:$0xff]
  %v454 = vld [vmem:[%s0 + $0x8] sm:$0xf]
  %v455 = vld [vmem:[%s0 + $0xc] sm:$0xff]
  %v456 = vld [vmem:[%s0 + $0x14] sm:$0xf]
  %v461 = vunpack.c.l.b16 %v453
  %v462 = vunpack.c.h.b16 %v453
  %v463 = vunpack.c.l.b16 %v454
  %v464 = vunpack.c.l.b16 %v455
  %v465 = vunpack.c.h.b16 %v455
  %v466 = vunpack.c.l.b16 %v456
  %v467 = vpack.c.b16 %v464, %v461
  %v468 = vpack.c.b16 %v465, %v462
  %v469 = vpack.c.b16 %v466, %v463
  %470 = vrot.lane.b32.xlu0 %v467, 96
  %v471 = vpop.permute.xlu0 %470
  %472 = vrot.lane.b32.xlu0 %v468, 96
  %v473 = vpop.permute.xlu0 %472
  %474 = vrot.lane.b32.xlu0 %v469, 96
  %v475 = vpop.permute.xlu0 %474
  %vm476 = vcmask 785408
  %v477 = vsel %vm476, %v471, %v473
  %v478 = vsel %vm476, %v473, %v475
  %481 = vst [vmem:[#allocation2 + $0x100] sm:$0xff] %v477
  %482 = vst [vmem:[#allocation2 + $0x108] sm:$0xff] %v478
  %v483 = vld [vmem:[%s25] sm:$0xff]
  %v484 = vld [vmem:[%s25 + $0x8] sm:$0xf]
  %v485 = vld [vmem:[%s25 + $0xc] sm:$0xff]
  %v486 = vld [vmem:[%s25 + $0x14] sm:$0xf]
  %v491 = vunpack.c.l.b16 %v483
  %v492 = vunpack.c.h.b16 %v483
  %v493 = vunpack.c.l.b16 %v484
  %v494 = vunpack.c.l.b16 %v485
  %v495 = vunpack.c.h.b16 %v485
  %v496 = vunpack.c.l.b16 %v486
  %v497 = vpack.c.b16 %v494, %v491
  %v498 = vpack.c.b16 %v495, %v492
  %v499 = vpack.c.b16 %v496, %v493
  %500 = vrot.lane.b32.xlu0 %v497, 96
  %v501 = vpop.permute.xlu0 %500
  %502 = vrot.lane.b32.xlu0 %v498, 96
  %v503 = vpop.permute.xlu0 %502
  %504 = vrot.lane.b32.xlu0 %v499, 96
  %v505 = vpop.permute.xlu0 %504
  %v506 = vsel %vm476, %v501, %v503
  %v507 = vsel %vm476, %v503, %v505
  %510 = vst [vmem:[#allocation2 + $0x110] sm:$0xff] %v506
  %511 = vst [vmem:[#allocation2 + $0x118] sm:$0xff] %v507
  %v512 = vld [vmem:[%s0] sm:$0xff]
  %v513 = vld [vmem:[%s0 + $0x8] sm:$0xf]
  %v514 = vld [vmem:[%s0 + $0xc] sm:$0xff]
  %v515 = vld [vmem:[%s0 + $0x14] sm:$0xf]
  %v520 = vunpack.c.l.b16 %v512
  %v521 = vunpack.c.h.b16 %v512
  %v522 = vunpack.c.l.b16 %v513
  %v523 = vunpack.c.l.b16 %v514
  %v524 = vunpack.c.h.b16 %v514
  %v525 = vunpack.c.l.b16 %v515
  %v526 = vpack.c.b16 %v523, %v520
  %v527 = vpack.c.b16 %v524, %v521
  %v528 = vpack.c.b16 %v525, %v522
  %529 = vrot.lane.b32.xlu0 %v526, 95
  %v530 = vpop.permute.xlu0 %529
  %531 = vrot.lane.b32.xlu0 %v527, 95
  %v532 = vpop.permute.xlu0 %531
  %533 = vrot.lane.b32.xlu0 %v528, 95
  %v534 = vpop.permute.xlu0 %533
  %vm535 = vcmask 777216
  %v536 = vsel %vm535, %v530, %v532
  %v537 = vsel %vm535, %v532, %v534
  %540 = vst [vmem:[#allocation2 + $0x120] sm:$0xff] %v536
  %541 = vst [vmem:[#allocation2 + $0x128] sm:$0xff] %v537
  %v542 = vld [vmem:[%s25] sm:$0xff]
  %v543 = vld [vmem:[%s25 + $0x8] sm:$0xf]
  %v544 = vld [vmem:[%s25 + $0xc] sm:$0xff]
  %v545 = vld [vmem:[%s25 + $0x14] sm:$0xf]
  %v550 = vunpack.c.l.b16 %v542
  %v551 = vunpack.c.h.b16 %v542
  %v552 = vunpack.c.l.b16 %v543
  %v553 = vunpack.c.l.b16 %v544
  %v554 = vunpack.c.h.b16 %v544
  %v555 = vunpack.c.l.b16 %v545
  %v556 = vpack.c.b16 %v553, %v550
  %v557 = vpack.c.b16 %v554, %v551
  %v558 = vpack.c.b16 %v555, %v552
  %559 = vrot.lane.b32.xlu0 %v556, 95
  %v560 = vpop.permute.xlu0 %559
  %561 = vrot.lane.b32.xlu0 %v557, 95
  %v562 = vpop.permute.xlu0 %561
  %563 = vrot.lane.b32.xlu0 %v558, 95
  %v564 = vpop.permute.xlu0 %563
  %v565 = vsel %vm535, %v560, %v562
  %v566 = vsel %vm535, %v562, %v564
  %569 = vst [vmem:[#allocation2 + $0x130] sm:$0xff] %v565
  %570 = vst [vmem:[#allocation2 + $0x138] sm:$0xff] %v566
  %v571 = vld [vmem:[%s0] sm:$0xff]
  %v572 = vld [vmem:[%s0 + $0x8] sm:$0xf]
  %v573 = vld [vmem:[%s0 + $0xc] sm:$0xff]
  %v574 = vld [vmem:[%s0 + $0x14] sm:$0xf]
  %v579 = vunpack.c.l.b16 %v571
  %v580 = vunpack.c.h.b16 %v571
  %v581 = vunpack.c.l.b16 %v572
  %v582 = vunpack.c.l.b16 %v573
  %v583 = vunpack.c.h.b16 %v573
  %v584 = vunpack.c.l.b16 %v574
  %v585 = vpack.c.b16 %v582, %v579
  %v586 = vpack.c.b16 %v583, %v580
  %v587 = vpack.c.b16 %v584, %v581
  %588 = vrot.lane.b32.xlu0 %v585, 94
  %v589 = vpop.permute.xlu0 %588
  %590 = vrot.lane.b32.xlu0 %v586, 94
  %v591 = vpop.permute.xlu0 %590
  %592 = vrot.lane.b32.xlu0 %v587, 94
  %v593 = vpop.permute.xlu0 %592
  %vm594 = vcmask 769024
  %v595 = vsel %vm594, %v589, %v591
  %v596 = vsel %vm594, %v591, %v593
  %599 = vst [vmem:[#allocation2 + $0x140] sm:$0xff] %v595
  %600 = vst [vmem:[#allocation2 + $0x148] sm:$0xff] %v596
  %v601 = vld [vmem:[%s25] sm:$0xff]
  %v602 = vld [vmem:[%s25 + $0x8] sm:$0xf]
  %v603 = vld [vmem:[%s25 + $0xc] sm:$0xff]
  %v604 = vld [vmem:[%s25 + $0x14] sm:$0xf]
  %v609 = vunpack.c.l.b16 %v601
  %v610 = vunpack.c.h.b16 %v601
  %v611 = vunpack.c.l.b16 %v602
  %v612 = vunpack.c.l.b16 %v603
  %v613 = vunpack.c.h.b16 %v603
  %v614 = vunpack.c.l.b16 %v604
  %v615 = vpack.c.b16 %v612, %v609
  %v616 = vpack.c.b16 %v613, %v610
  %v617 = vpack.c.b16 %v614, %v611
  %618 = vrot.lane.b32.xlu0 %v615, 94
  %v619 = vpop.permute.xlu0 %618
  %620 = vrot.lane.b32.xlu0 %v616, 94
  %v621 = vpop.permute.xlu0 %620
  %622 = vrot.lane.b32.xlu0 %v617, 94
  %v623 = vpop.permute.xlu0 %622
  %v624 = vsel %vm594, %v619, %v621
  %v625 = vsel %vm594, %v621, %v623
  %628 = vst [vmem:[#allocation2 + $0x150] sm:$0xff] %v624
  %629 = vst [vmem:[#allocation2 + $0x158] sm:$0xff] %v625
  %v630 = vld [vmem:[%s0] sm:$0xff]
  %v631 = vld [vmem:[%s0 + $0x8] sm:$0xf]
  %v632 = vld [vmem:[%s0 + $0xc] sm:$0xff]
  %v633 = vld [vmem:[%s0 + $0x14] sm:$0xf]
  %v638 = vunpack.c.l.b16 %v630
  %v639 = vunpack.c.h.b16 %v630
  %v640 = vunpack.c.l.b16 %v631
  %v641 = vunpack.c.l.b16 %v632
  %v642 = vunpack.c.h.b16 %v632
  %v643 = vunpack.c.l.b16 %v633
  %v644 = vpack.c.b16 %v641, %v638
  %v645 = vpack.c.b16 %v642, %v639
  %v646 = vpack.c.b16 %v643, %v640
  %647 = vrot.lane.b32.xlu0 %v644, 93
  %v648 = vpop.permute.xlu0 %647
  %649 = vrot.lane.b32.xlu0 %v645, 93
  %v650 = vpop.permute.xlu0 %649
  %651 = vrot.lane.b32.xlu0 %v646, 93
  %v652 = vpop.permute.xlu0 %651
  %vm653 = vcmask 760832
  %v654 = vsel %vm653, %v648, %v650
  %v655 = vsel %vm653, %v650, %v652
  %658 = vst [vmem:[#allocation2 + $0x160] sm:$0xff] %v654
  %659 = vst [vmem:[#allocation2 + $0x168] sm:$0xff] %v655
  %v660 = vld [vmem:[%s25] sm:$0xff]
  %v661 = vld [vmem:[%s25 + $0x8] sm:$0xf]
  %v662 = vld [vmem:[%s25 + $0xc] sm:$0xff]
  %v663 = vld [vmem:[%s25 + $0x14] sm:$0xf]
  %v668 = vunpack.c.l.b16 %v660
  %v669 = vunpack.c.h.b16 %v660
  %v670 = vunpack.c.l.b16 %v661
  %v671 = vunpack.c.l.b16 %v662
  %v672 = vunpack.c.h.b16 %v662
  %v673 = vunpack.c.l.b16 %v663
  %v674 = vpack.c.b16 %v671, %v668
  %v675 = vpack.c.b16 %v672, %v669
  %v676 = vpack.c.b16 %v673, %v670
  %677 = vrot.lane.b32.xlu0 %v674, 93
  %v678 = vpop.permute.xlu0 %677
  %679 = vrot.lane.b32.xlu0 %v675, 93
  %v680 = vpop.permute.xlu0 %679
  %681 = vrot.lane.b32.xlu0 %v676, 93
  %v682 = vpop.permute.xlu0 %681
  %v683 = vsel %vm653, %v678, %v680
  %v684 = vsel %vm653, %v680, %v682
  %687 = vst [vmem:[#allocation2 + $0x170] sm:$0xff] %v683
  %688 = vst [vmem:[#allocation2 + $0x178] sm:$0xff] %v684
  %v689 = vld [vmem:[%s0] sm:$0xff]
  %v690 = vld [vmem:[%s0 + $0x8] sm:$0xf]
  %v691 = vld [vmem:[%s0 + $0xc] sm:$0xff]
  %v692 = vld [vmem:[%s0 + $0x14] sm:$0xf]
  %v697 = vunpack.c.l.b16 %v689
  %v698 = vunpack.c.h.b16 %v689
  %v699 = vunpack.c.l.b16 %v690
  %v700 = vunpack.c.l.b16 %v691
  %v701 = vunpack.c.h.b16 %v691
  %v702 = vunpack.c.l.b16 %v692
  %v703 = vpack.c.b16 %v700, %v697
  %v704 = vpack.c.b16 %v701, %v698
  %v705 = vpack.c.b16 %v702, %v699
  %706 = vrot.lane.b32.xlu0 %v703, 80
  %v707 = vpop.permute.xlu0 %706
  %708 = vrot.lane.b32.xlu0 %v704, 80
  %v709 = vpop.permute.xlu0 %708
  %710 = vrot.lane.b32.xlu0 %v705, 80
  %v711 = vpop.permute.xlu0 %710
  %vm712 = vcmask 654336
  %v713 = vsel %vm712, %v707, %v709
  %v714 = vsel %vm712, %v709, %v711
  %717 = vst [vmem:[#allocation2 + $0x180] sm:$0xff] %v713
  %718 = vst [vmem:[#allocation2 + $0x188] sm:$0xff] %v714
  %v719 = vld [vmem:[%s25] sm:$0xff]
  %v720 = vld [vmem:[%s25 + $0x8] sm:$0xf]
  %v721 = vld [vmem:[%s25 + $0xc] sm:$0xff]
  %v722 = vld [vmem:[%s25 + $0x14] sm:$0xf]
  %v727 = vunpack.c.l.b16 %v719
  %v728 = vunpack.c.h.b16 %v719
  %v729 = vunpack.c.l.b16 %v720
  %v730 = vunpack.c.l.b16 %v721
  %v731 = vunpack.c.h.b16 %v721
  %v732 = vunpack.c.l.b16 %v722
  %v733 = vpack.c.b16 %v730, %v727
  %v734 = vpack.c.b16 %v731, %v728
  %v735 = vpack.c.b16 %v732, %v729
  %736 = vrot.lane.b32.xlu0 %v733, 80
  %v737 = vpop.permute.xlu0 %736
  %738 = vrot.lane.b32.xlu0 %v734, 80
  %v739 = vpop.permute.xlu0 %738
  %740 = vrot.lane.b32.xlu0 %v735, 80
  %v741 = vpop.permute.xlu0 %740
  %v742 = vsel %vm712, %v737, %v739
  %v743 = vsel %vm712, %v739, %v741
  %746 = vst [vmem:[#allocation2 + $0x190] sm:$0xff] %v742
  %747 = vst [vmem:[#allocation2 + $0x198] sm:$0xff] %v743
  %v748 = vld [vmem:[%s0] sm:$0xff]
  %v749 = vld [vmem:[%s0 + $0x8] sm:$0xf]
  %v750 = vld [vmem:[%s0 + $0xc] sm:$0xff]
  %v751 = vld [vmem:[%s0 + $0x14] sm:$0xf]
  %v756 = vunpack.c.l.b16 %v748
  %v757 = vunpack.c.h.b16 %v748
  %v758 = vunpack.c.l.b16 %v749
  %v759 = vunpack.c.l.b16 %v750
  %v760 = vunpack.c.h.b16 %v750
  %v761 = vunpack.c.l.b16 %v751
  %v762 = vpack.c.b16 %v759, %v756
  %v763 = vpack.c.b16 %v760, %v757
  %v764 = vpack.c.b16 %v761, %v758
  %765 = vrot.lane.b32.xlu0 %v762, 79
  %v766 = vpop.permute.xlu0 %765
  %767 = vrot.lane.b32.xlu0 %v763, 79
  %v768 = vpop.permute.xlu0 %767
  %769 = vrot.lane.b32.xlu0 %v764, 79
  %v770 = vpop.permute.xlu0 %769
  %vm771 = vcmask 646144
  %v772 = vsel %vm771, %v766, %v768
  %v773 = vsel %vm771, %v768, %v770
  %776 = vst [vmem:[#allocation2 + $0x1a0] sm:$0xff] %v772
  %777 = vst [vmem:[#allocation2 + $0x1a8] sm:$0xff] %v773
  %v778 = vld [vmem:[%s25] sm:$0xff]
  %v779 = vld [vmem:[%s25 + $0x8] sm:$0xf]
  %v780 = vld [vmem:[%s25 + $0xc] sm:$0xff]
  %v781 = vld [vmem:[%s25 + $0x14] sm:$0xf]
  %v786 = vunpack.c.l.b16 %v778
  %v787 = vunpack.c.h.b16 %v778
  %v788 = vunpack.c.l.b16 %v779
  %v789 = vunpack.c.l.b16 %v780
  %v790 = vunpack.c.h.b16 %v780
  %v791 = vunpack.c.l.b16 %v781
  %v792 = vpack.c.b16 %v789, %v786
  %v793 = vpack.c.b16 %v790, %v787
  %v794 = vpack.c.b16 %v791, %v788
  %795 = vrot.lane.b32.xlu0 %v792, 79
  %v796 = vpop.permute.xlu0 %795
  %797 = vrot.lane.b32.xlu0 %v793, 79
  %v798 = vpop.permute.xlu0 %797
  %799 = vrot.lane.b32.xlu0 %v794, 79
  %v800 = vpop.permute.xlu0 %799
  %v801 = vsel %vm771, %v796, %v798
  %v802 = vsel %vm771, %v798, %v800
  %805 = vst [vmem:[#allocation2 + $0x1b0] sm:$0xff] %v801
  %806 = vst [vmem:[#allocation2 + $0x1b8] sm:$0xff] %v802
  %v807 = vld [vmem:[%s0] sm:$0xff]
  %v808 = vld [vmem:[%s0 + $0x8] sm:$0xf]
  %v809 = vld [vmem:[%s0 + $0xc] sm:$0xff]
  %v810 = vld [vmem:[%s0 + $0x14] sm:$0xf]
  %v815 = vunpack.c.l.b16 %v807
  %v816 = vunpack.c.h.b16 %v807
  %v817 = vunpack.c.l.b16 %v808
  %v818 = vunpack.c.l.b16 %v809
  %v819 = vunpack.c.h.b16 %v809
  %v820 = vunpack.c.l.b16 %v810
  %v821 = vpack.c.b16 %v818, %v815
  %v822 = vpack.c.b16 %v819, %v816
  %v823 = vpack.c.b16 %v820, %v817
  %824 = vrot.lane.b32.xlu0 %v821, 78
  %v825 = vpop.permute.xlu0 %824
  %826 = vrot.lane.b32.xlu0 %v822, 78
  %v827 = vpop.permute.xlu0 %826
  %828 = vrot.lane.b32.xlu0 %v823, 78
  %v829 = vpop.permute.xlu0 %828
  %vm830 = vcmask 637952
  %v831 = vsel %vm830, %v825, %v827
  %v832 = vsel %vm830, %v827, %v829
  %835 = vst [vmem:[#allocation2 + $0x1c0] sm:$0xff] %v831
  %836 = vst [vmem:[#allocation2 + $0x1c8] sm:$0xff] %v832
  %v837 = vld [vmem:[%s25] sm:$0xff]
  %v838 = vld [vmem:[%s25 + $0x8] sm:$0xf]
  %v839 = vld [vmem:[%s25 + $0xc] sm:$0xff]
  %v840 = vld [vmem:[%s25 + $0x14] sm:$0xf]
  %v845 = vunpack.c.l.b16 %v837
  %v846 = vunpack.c.h.b16 %v837
  %v847 = vunpack.c.l.b16 %v838
  %v848 = vunpack.c.l.b16 %v839
  %v849 = vunpack.c.h.b16 %v839
  %v850 = vunpack.c.l.b16 %v840
  %v851 = vpack.c.b16 %v848, %v845
  %v852 = vpack.c.b16 %v849, %v846
  %v853 = vpack.c.b16 %v850, %v847
  %854 = vrot.lane.b32.xlu0 %v851, 78
  %v855 = vpop.permute.xlu0 %854
  %856 = vrot.lane.b32.xlu0 %v852, 78
  %v857 = vpop.permute.xlu0 %856
  %858 = vrot.lane.b32.xlu0 %v853, 78
  %v859 = vpop.permute.xlu0 %858
  %v860 = vsel %vm830, %v855, %v857
  %v861 = vsel %vm830, %v857, %v859
  %864 = vst [vmem:[#allocation2 + $0x1d0] sm:$0xff] %v860
  %865 = vst [vmem:[#allocation2 + $0x1d8] sm:$0xff] %v861
  %v866 = vld [vmem:[%s0] sm:$0xff]
  %v867 = vld [vmem:[%s0 + $0x8] sm:$0xf]
  %v868 = vld [vmem:[%s0 + $0xc] sm:$0xff]
  %v869 = vld [vmem:[%s0 + $0x14] sm:$0xf]
  %v874 = vunpack.c.l.b16 %v866
  %v875 = vunpack.c.h.b16 %v866
  %v876 = vunpack.c.l.b16 %v867
  %v877 = vunpack.c.l.b16 %v868
  %v878 = vunpack.c.h.b16 %v868
  %v879 = vunpack.c.l.b16 %v869
  %v880 = vpack.c.b16 %v877, %v874
  %v881 = vpack.c.b16 %v878, %v875
  %v882 = vpack.c.b16 %v879, %v876
  %883 = vrot.lane.b32.xlu0 %v880, 77
  %v884 = vpop.permute.xlu0 %883
  %885 = vrot.lane.b32.xlu0 %v881, 77
  %v886 = vpop.permute.xlu0 %885
  %887 = vrot.lane.b32.xlu0 %v882, 77
  %v888 = vpop.permute.xlu0 %887
  %vm889 = vcmask 629760
  %v890 = vsel %vm889, %v884, %v886
  %v891 = vsel %vm889, %v886, %v888
  %894 = vst [vmem:[#allocation2 + $0x1e0] sm:$0xff] %v890
  %895 = vst [vmem:[#allocation2 + $0x1e8] sm:$0xff] %v891
  %v896 = vld [vmem:[%s25] sm:$0xff]
  %v897 = vld [vmem:[%s25 + $0x8] sm:$0xf]
  %v898 = vld [vmem:[%s25 + $0xc] sm:$0xff]
  %v899 = vld [vmem:[%s25 + $0x14] sm:$0xf]
  %v904 = vunpack.c.l.b16 %v896
  %v905 = vunpack.c.h.b16 %v896
  %v906 = vunpack.c.l.b16 %v897
  %v907 = vunpack.c.l.b16 %v898
  %v908 = vunpack.c.h.b16 %v898
  %v909 = vunpack.c.l.b16 %v899
  %v910 = vpack.c.b16 %v907, %v904
  %v911 = vpack.c.b16 %v908, %v905
  %v912 = vpack.c.b16 %v909, %v906
  %913 = vrot.lane.b32.xlu0 %v910, 77
  %v914 = vpop.permute.xlu0 %913
  %915 = vrot.lane.b32.xlu0 %v911, 77
  %v916 = vpop.permute.xlu0 %915
  %917 = vrot.lane.b32.xlu0 %v912, 77
  %v918 = vpop.permute.xlu0 %917
  %v919 = vsel %vm889, %v914, %v916
  %v920 = vsel %vm889, %v916, %v918
  %923 = vst [vmem:[#allocation2 + $0x1f0] sm:$0xff] %v919
  %924 = vst [vmem:[#allocation2 + $0x1f8] sm:$0xff] %v920
  %v925 = vld [vmem:[%s1] sm:$0xff]
  %v926 = vld [vmem:[%s1 + $0x8] sm:$0xff]
  %v927 = vld [vmem:[%s1 + $0x10] sm:$0xff]
  %v928 = vld [vmem:[%s1 + $0x18] sm:$0xff]
  %v929 = vld [vmem:[#allocation2] sm:$0xff]
  %v930 = vld [vmem:[#allocation2 + $0x8] sm:$0xff]
  %v931 = vld [vmem:[#allocation2 + $0x10] sm:$0xff]
  %v932 = vld [vmem:[#allocation2 + $0x18] sm:$0xff]
  %v933 = vld [vmem:[#allocation2 + $0x20] sm:$0xff]
  %v934 = vld [vmem:[#allocation2 + $0x28] sm:$0xff]
  %v935 = vld [vmem:[#allocation2 + $0x30] sm:$0xff]
  %v936 = vld [vmem:[#allocation2 + $0x38] sm:$0xff]
  %v937 = vld [vmem:[#allocation2 + $0x40] sm:$0xff]
  %v938 = vld [vmem:[#allocation2 + $0x48] sm:$0xff]
  %v939 = vld [vmem:[#allocation2 + $0x50] sm:$0xff]
  %v940 = vld [vmem:[#allocation2 + $0x58] sm:$0xff]
  %v941 = vld [vmem:[#allocation2 + $0x60] sm:$0xff]
  %v942 = vld [vmem:[#allocation2 + $0x68] sm:$0xff]
  %v943 = vld [vmem:[#allocation2 + $0x70] sm:$0xff]
  %v944 = vld [vmem:[#allocation2 + $0x78] sm:$0xff]
  %v945 = vld [vmem:[#allocation2 + $0x80] sm:$0xff]
  %v946 = vld [vmem:[#allocation2 + $0x88] sm:$0xff]
  %v947 = vld [vmem:[#allocation2 + $0x90] sm:$0xff]
  %v948 = vld [vmem:[#allocation2 + $0x98] sm:$0xff]
  %v949 = vld [vmem:[#allocation2 + $0xa0] sm:$0xff]
  %v950 = vld [vmem:[#allocation2 + $0xa8] sm:$0xff]
  %v951 = vld [vmem:[#allocation2 + $0xb0] sm:$0xff]
  %v952 = vld [vmem:[#allocation2 + $0xb8] sm:$0xff]
  %v953 = vld [vmem:[#allocation2 + $0xc0] sm:$0xff]
  %v954 = vld [vmem:[#allocation2 + $0xc8] sm:$0xff]
  %v955 = vld [vmem:[#allocation2 + $0xd0] sm:$0xff]
  %v956 = vld [vmem:[#allocation2 + $0xd8] sm:$0xff]
  %v957 = vld [vmem:[#allocation2 + $0xe0] sm:$0xff]
  %v958 = vld [vmem:[#allocation2 + $0xe8] sm:$0xff]
  %v959 = vld [vmem:[#allocation2 + $0xf0] sm:$0xff]
  %v960 = vld [vmem:[#allocation2 + $0xf8] sm:$0xff]
  %v961 = vld [vmem:[#allocation2 + $0x100] sm:$0xff]
  %v962 = vld [vmem:[#allocation2 + $0x108] sm:$0xff]
  %v963 = vld [vmem:[#allocation2 + $0x110] sm:$0xff]
  %v964 = vld [vmem:[#allocation2 + $0x118] sm:$0xff]
  %v965 = vld [vmem:[#allocation2 + $0x120] sm:$0xff]
  %v966 = vld [vmem:[#allocation2 + $0x128] sm:$0xff]
  %v967 = vld [vmem:[#allocation2 + $0x130] sm:$0xff]
  %v968 = vld [vmem:[#allocation2 + $0x138] sm:$0xff]
  %v969 = vld [vmem:[#allocation2 + $0x140] sm:$0xff]
  %v970 = vld [vmem:[#allocation2 + $0x148] sm:$0xff]
  %v971 = vld [vmem:[#allocation2 + $0x150] sm:$0xff]
  %v972 = vld [vmem:[#allocation2 + $0x158] sm:$0xff]
  %v973 = vld [vmem:[#allocation2 + $0x160] sm:$0xff]
  %v974 = vld [vmem:[#allocation2 + $0x168] sm:$0xff]
  %v975 = vld [vmem:[#allocation2 + $0x170] sm:$0xff]
  %v976 = vld [vmem:[#allocation2 + $0x178] sm:$0xff]
  %v977 = vld [vmem:[#allocation2 + $0x180] sm:$0xff]
  %v978 = vld [vmem:[#allocation2 + $0x188] sm:$0xff]
  %v979 = vld [vmem:[#allocation2 + $0x190] sm:$0xff]
  %v980 = vld [vmem:[#allocation2 + $0x198] sm:$0xff]
  %v981 = vld [vmem:[#allocation2 + $0x1a0] sm:$0xff]
  %v982 = vld [vmem:[#allocation2 + $0x1a8] sm:$0xff]
  %v983 = vld [vmem:[#allocation2 + $0x1b0] sm:$0xff]
  %v984 = vld [vmem:[#allocation2 + $0x1b8] sm:$0xff]
  %v985 = vld [vmem:[#allocation2 + $0x1c0] sm:$0xff]
  %v986 = vld [vmem:[#allocation2 + $0x1c8] sm:$0xff]
  %v987 = vld [vmem:[#allocation2 + $0x1d0] sm:$0xff]
  %v988 = vld [vmem:[#allocation2 + $0x1d8] sm:$0xff]
  %v989 = vld [vmem:[#allocation2 + $0x1e0] sm:$0xff]
  %v990 = vld [vmem:[#allocation2 + $0x1e8] sm:$0xff]
  %v991 = vld [vmem:[#allocation2 + $0x1f0] sm:$0xff]
  %v992 = vld [vmem:[#allocation2 + $0x1f8] sm:$0xff]
  %v997 = vunpack.c.l.b16 %v925
  %v998 = vunpack.c.h.b16 %v925
  %v999 = vunpack.c.l.b16 %v926
  %v1000 = vunpack.c.h.b16 %v926
  %v1001 = vunpack.c.l.b16 %v927
  %v1002 = vunpack.c.h.b16 %v927
  %v1003 = vunpack.c.l.b16 %v928
  %v1004 = vunpack.c.h.b16 %v928
  %v1005 = vpack.c.b16 %v999, %v997
  %v1006 = vpack.c.b16 %v1000, %v998
  %v1007 = vpack.c.b16 %v1003, %v1001
  %v1008 = vpack.c.b16 %v1004, %v1002
  %1013 = vmatprep.subr.bf16.mxu0 %v930
  %1014 = vmatpush1.bf16.msra.mxu0 %v929
  %1015 = vmatprep.subr.bf16.mxu0 %v934
  %1016 = vmatpush1.bf16.msra.mxu0 %v933
  %1017 = vmatprep.subr.bf16.mxu0 %v938
  %1018 = vmatpush1.bf16.msra.mxu0 %v937
  %1019 = vmatprep.subr.bf16.mxu0 %v942
  %1020 = vmatpush1.bf16.msra.mxu0 %v941
  %1021 = vmatprep.subr.bf16.mxu0 %v946
  %1022 = vmatpush1.bf16.msra.mxu0 %v945
  %1023 = vmatprep.subr.bf16.mxu0 %v950
  %1024 = vmatpush1.bf16.msra.mxu0 %v949
  %1025 = vmatprep.subr.bf16.mxu0 %v954
  %1026 = vmatpush1.bf16.msra.mxu0 %v953
  %1027 = vmatprep.subr.bf16.mxu0 %v958
  %1028 = vmatpush1.bf16.msra.mxu0 %v957
  %1029 = vmatprep.subr.bf16.mxu0 %v962
  %1030 = vmatpush1.bf16.msra.mxu0 %v961
  %1031 = vmatprep.subr.bf16.mxu0 %v966
  %1032 = vmatpush1.bf16.msra.mxu0 %v965
  %1033 = vmatprep.subr.bf16.mxu0 %v970
  %1034 = vmatpush1.bf16.msra.mxu0 %v969
  %1035 = vmatprep.subr.bf16.mxu0 %v974
  %1036 = vmatpush1.bf16.msra.mxu0 %v973
  %1037 = vmatprep.subr.bf16.mxu0 %v978
  %1038 = vmatpush1.bf16.msra.mxu0 %v977
  %1039 = vmatprep.subr.bf16.mxu0 %v982
  %1040 = vmatpush1.bf16.msra.mxu0 %v981
  %1041 = vmatprep.subr.bf16.mxu0 %v986
  %1042 = vmatpush1.bf16.msra.mxu0 %v985
  %1043 = vmatprep.subr.bf16.mxu0 %v990
  %1044 = vmatpush1.bf16.msra.mxu0 %v989
  %1045 = vmatprep.mubr.bf16.mxu0 %v1006
  %1046 = vmatmul.mubr.bf16.gmra.mrb[0].mxu0 %v1005
  %v1047 = vpop.f32.mrb[0].mxu0
  %v1048 = vadd.f32 0.0, %v1047
  %v1049 = vpop.f32.mrb[0].mxu0
  %v1050 = vadd.f32 0.0, %v1049
  %v1051 = vpop.f32.mrb[0].mxu0
  %v1052 = vadd.f32 0.0, %v1051
  %v1053 = vpop.f32.mrb[0].mxu0
  %v1054 = vadd.f32 0.0, %v1053
  %1055 = vmatprep.mubr.bf16.mxu0 %v1008
  %1056 = vmatmul.mubr.bf16.gmra.mrb[0].mxu0 %v1007
  %v1057 = vpop.f32.mrb[0].mxu0
  %v1058 = vadd.f32 0.0, %v1057
  %v1059 = vpop.f32.mrb[0].mxu0
  %v1060 = vadd.f32 0.0, %v1059
  %v1061 = vpop.f32.mrb[0].mxu0
  %v1062 = vadd.f32 0.0, %v1061
  %v1063 = vpop.f32.mrb[0].mxu0
  %v1064 = vadd.f32 0.0, %v1063
  %1065 = vdwg.mxu0
  %1066 = vmatprep.subr.bf16.mxu0 %v932
  %1067 = vmatpush1.bf16.msra.mxu0 %v931
  %1068 = vmatprep.subr.bf16.mxu0 %v936
  %1069 = vmatpush1.bf16.msra.mxu0 %v935
  %1070 = vmatprep.subr.bf16.mxu0 %v940
  %1071 = vmatpush1.bf16.msra.mxu0 %v939
  %1072 = vmatprep.subr.bf16.mxu0 %v944
  %1073 = vmatpush1.bf16.msra.mxu0 %v943
  %1074 = vmatprep.subr.bf16.mxu0 %v948
  %1075 = vmatpush1.bf16.msra.mxu0 %v947
  %1076 = vmatprep.subr.bf16.mxu0 %v952
  %1077 = vmatpush1.bf16.msra.mxu0 %v951
  %1078 = vmatprep.subr.bf16.mxu0 %v956
  %1079 = vmatpush1.bf16.msra.mxu0 %v955
  %1080 = vmatprep.subr.bf16.mxu0 %v960
  %1081 = vmatpush1.bf16.msra.mxu0 %v959
  %1082 = vmatprep.subr.bf16.mxu0 %v964
  %1083 = vmatpush1.bf16.msra.mxu0 %v963
  %1084 = vmatprep.subr.bf16.mxu0 %v968
  %1085 = vmatpush1.bf16.msra.mxu0 %v967
  %1086 = vmatprep.subr.bf16.mxu0 %v972
  %1087 = vmatpush1.bf16.msra.mxu0 %v971
  %1088 = vmatprep.subr.bf16.mxu0 %v976
  %1089 = vmatpush1.bf16.msra.mxu0 %v975
  %1090 = vmatprep.subr.bf16.mxu0 %v980
  %1091 = vmatpush1.bf16.msra.mxu0 %v979
  %1092 = vmatprep.subr.bf16.mxu0 %v984
  %1093 = vmatpush1.bf16.msra.mxu0 %v983
  %1094 = vmatprep.subr.bf16.mxu0 %v988
  %1095 = vmatpush1.bf16.msra.mxu0 %v987
  %1096 = vmatprep.subr.bf16.mxu0 %v992
  %1097 = vmatpush1.bf16.msra.mxu0 %v991
  %1098 = vmatprep.mubr.bf16.mxu0 %v1006
  %1099 = vmatmul.mubr.bf16.gmra.mrb[0].mxu0 %v1005
  %v1100 = vpop.f32.mrb[0].mxu0
  %v1101 = vadd.f32 0.0, %v1100
  %v1102 = vpop.f32.mrb[0].mxu0
  %v1103 = vadd.f32 0.0, %v1102
  %v1104 = vpop.f32.mrb[0].mxu0
  %v1105 = vadd.f32 0.0, %v1104
  %v1106 = vpop.f32.mrb[0].mxu0
  %v1107 = vadd.f32 0.0, %v1106
  %1108 = vmatprep.mubr.bf16.mxu0 %v1008
  %1109 = vmatmul.mubr.bf16.gmra.mrb[0].mxu0 %v1007
  %v1110 = vpop.f32.mrb[0].mxu0
  %v1111 = vadd.f32 0.0, %v1110
  %v1112 = vpop.f32.mrb[0].mxu0
  %v1113 = vadd.f32 0.0, %v1112
  %v1114 = vpop.f32.mrb[0].mxu0
  %v1115 = vadd.f32 0.0, %v1114
  %v1116 = vpop.f32.mrb[0].mxu0
  %v1117 = vadd.f32 0.0, %v1116
  %1118 = vdwg.mxu0
  %vm1119 = vcmp.gt.f32.partialorder %v1048, 0.0
  %vm1120 = vcmp.gt.f32.partialorder %v1050, 0.0
  %vm1121 = vcmp.gt.f32.partialorder %v1101, 0.0
  %vm1122 = vcmp.gt.f32.partialorder %v1103, 0.0
  %vm1123 = vcmp.gt.f32.partialorder %v1052, 0.0
  %vm1124 = vcmp.gt.f32.partialorder %v1054, 0.0
  %vm1125 = vcmp.gt.f32.partialorder %v1105, 0.0
  %vm1126 = vcmp.gt.f32.partialorder %v1107, 0.0
  %vm1127 = vcmp.gt.f32.partialorder %v1058, 0.0
  %vm1128 = vcmp.gt.f32.partialorder %v1060, 0.0
  %vm1129 = vcmp.gt.f32.partialorder %v1111, 0.0
  %vm1130 = vcmp.gt.f32.partialorder %v1113, 0.0
  %vm1131 = vcmp.gt.f32.partialorder %v1062, 0.0
  %vm1132 = vcmp.gt.f32.partialorder %v1064, 0.0
  %vm1133 = vcmp.gt.f32.partialorder %v1115, 0.0
  %vm1134 = vcmp.gt.f32.partialorder %v1117, 0.0
  %v1135 = vmul.f32 %v1048, 5.3506
  %v1136 = vmul.f32 %v1050, 5.3506
  %v1137 = vmul.f32 %v1101, 5.3506
  %v1138 = vmul.f32 %v1103, 5.3506
  %v1139 = vmul.f32 %v1052, 5.3506
  %v1140 = vmul.f32 %v1054, 5.3506
  %v1141 = vmul.f32 %v1105, 5.3506
  %v1142 = vmul.f32 %v1107, 5.3506
  %v1143 = vmul.f32 %v1058, 5.3506
  %v1144 = vmul.f32 %v1060, 5.3506
  %v1145 = vmul.f32 %v1111, 5.3506
  %v1146 = vmul.f32 %v1113, 5.3506
  %v1147 = vmul.f32 %v1062, 5.3506
  %v1148 = vmul.f32 %v1064, 5.3506
  %v1149 = vmul.f32 %v1115, 5.3506
  %v1150 = vmul.f32 %v1117, 5.3506
  %v1151 = vsel %vm1119, %v1048, %v1135
  %v1152 = vsel %vm1120, %v1050, %v1136
  %v1153 = vsel %vm1121, %v1101, %v1137
  %v1154 = vsel %vm1122, %v1103, %v1138
  %v1155 = vsel %vm1123, %v1052, %v1139
  %v1156 = vsel %vm1124, %v1054, %v1140
  %v1157 = vsel %vm1125, %v1105, %v1141
  %v1158 = vsel %vm1126, %v1107, %v1142
  %v1159 = vsel %vm1127, %v1058, %v1143
  %v1160 = vsel %vm1128, %v1060, %v1144
  %v1161 = vsel %vm1129, %v1111, %v1145
  %v1162 = vsel %vm1130, %v1113, %v1146
  %v1163 = vsel %vm1131, %v1062, %v1147
  %v1164 = vsel %vm1132, %v1064, %v1148
  %v1165 = vsel %vm1133, %v1115, %v1149
  %v1166 = vsel %vm1134, %v1117, %v1150
  %1167 = vst [vmem:[%s2] sm:$0xff] %v1151
  %1168 = vst [vmem:[%s2 + $0x8] sm:$0xff] %v1152
  %1169 = vst [vmem:[%s2 + $0x10] sm:$0xff] %v1155
  %1170 = vst [vmem:[%s2 + $0x18] sm:$0xff] %v1156
  %1171 = vst [vmem:[%s2 + $0x20] sm:$0xff] %v1159
  %1172 = vst [vmem:[%s2 + $0x28] sm:$0xff] %v1160
  %1173 = vst [vmem:[%s2 + $0x30] sm:$0xff] %v1163
  %1174 = vst [vmem:[%s2 + $0x38] sm:$0xff] %v1164
  %s1175 = scalar_lea.vmem %s2, 64
  %1176 = vst [vmem:[%s1175] sm:$0xff] %v1153
  %1177 = vst [vmem:[%s1175 + $0x8] sm:$0xff] %v1154
  %1178 = vst [vmem:[%s1175 + $0x10] sm:$0xff] %v1157
  %1179 = vst [vmem:[%s1175 + $0x18] sm:$0xff] %v1158
  %1180 = vst [vmem:[%s1175 + $0x20] sm:$0xff] %v1161
  %1181 = vst [vmem:[%s1175 + $0x28] sm:$0xff] %v1162
  %1182 = vst [vmem:[%s1175 + $0x30] sm:$0xff] %v1165
  %1183 = vst [vmem:[%s1175 + $0x38] sm:$0xff] %v1166
  // Predicated region
  $region10: #{conv_transpose_model.1} parent=0 // pred_check
    _
  $region11: #{conv_transpose_model.1} parent=0 // pred_check_branch
    %1185 = sbr.rel (0) target = $region13
  $region12: #{conv_transpose_model.1} parent=0 // pred_region
    _
  $region13: #{conv_transpose_model.1} parent=0 // pred_fallthru
    _
  // Predicated region
  $region14: #{conv_transpose_model.1} parent=0 // pred_check
    _
  $region15: #{conv_transpose_model.1} parent=0 // pred_check_branch
    %1187 = sbr.rel (0) target = $region17
  $region16: #{conv_transpose_model.1} parent=0 // pred_region
    _
  $region17: #{conv_transpose_model.1} parent=0 // pred_fallthru
    _

</llo_original>
